<compile_context>
chip_gen: v7x
topology: tpu7x:2x2x1
jax: 0.10.0
libtpu: 0.0.40
codegen_flags: <defaults>
</compile_context>

<pallas_src>
import numpy as np
import jax
import jax.numpy as jnp
from jax.experimental import pallas as pl
from jax.experimental.pallas import tpu as pltpu

TAU = 2.0      # dataset_name not in {'ucy'}
H = 32         # encoder / processor / decoder hidden size
H2 = 2 * H     # fused (ped|obs) width


# ----------------------------------------------------------------------------
# helpers
# ----------------------------------------------------------------------------
def _round_up(x, m):
    return (x + m - 1) // m * m


def _cdiv(a, b):
    return -(-a // b)


def _min_grid_steps():
    """>=2 grid steps only when the chip exposes >1 TensorCore (v7x-like)."""
    try:
        d = jax.devices()[0]
        n = getattr(d, "num_cores", None)
        if isinstance(n, int) and n >= 2:
            return 2
        kind = str(getattr(d, "device_kind", "")).lower()
        if any(t in kind for t in ("v7", "7x", "v4", "v3")):
            return 2
    except Exception:
        pass
    return 1


def _choose_tile(n, min_steps, max_tile=512):
    """Agent tile: minimal padding, <=max_tile rows, >=min_steps grid steps."""
    n8 = _round_up(max(n, 8), 8)
    steps = max(min_steps, _cdiv(n8, max_tile))
    tn = _round_up(_cdiv(n8, steps), 8)
    n_pad = _round_up(n8, tn)
    return tn, n_pad


# ----------------------------------------------------------------------------
# weight packing: fused block-diagonal slots stacked along sublanes
#   w1 : (d_in, 64)        [pad(We1_ped) | pad(We1_obs)]                (bf16)
#   ws : (6*64, 64)        [enc2 | proc | dec1 | dec2 | pred/coll1 | coll2]
#   b  : (7, 64)           one bias row per layer                       (f32)
# ----------------------------------------------------------------------------
def pack_params(ped_params, obs_params, ped_dim, obs_dim):
    f32 = jnp.float32
    d_in = _round_up(max(ped_dim, obs_dim), 8)

    def pad_rows(w):
        return jnp.pad(w, ((0, d_in - w.shape[0]), (0, 0)))

    w1 = jnp.concatenate([pad_rows(ped_params["We1"]),
                          pad_rows(obs_params["We1"])], axis=1)

    def bd(wp, wo):  # block-diagonal (64, 64)
        top = jnp.concatenate([wp, jnp.zeros((H, H), f32)], axis=1)
        bot = jnp.concatenate([jnp.zeros((H, H), f32), wo], axis=1)
        return jnp.concatenate([top, bot], axis=0)

    w_enc2 = bd(ped_params["We2"], obs_params["We2"])
    w_proc = bd(ped_params["Wp"], obs_params["Wp"])
    w_dec1 = bd(ped_params["Wd1"], obs_params["Wd1"])
    w_dec2 = bd(ped_params["Wd2"], obs_params["Wd2"])

    # fused predictor / collision-layer-1 slot:
    #   cols 0:2 ped predictor, cols 2:4 obs predictor, cols 32:64 ped Wc1.
    w_fin = jnp.zeros((H2, H2), f32)
    w_fin = w_fin.at[:H, 0:2].set(ped_params["Wpr"])
    w_fin = w_fin.at[H:, 2:4].set(obs_params["Wpr"])
    w_fin = w_fin.at[:H, H:].set(ped_params["Wc1"])

    # collision layer-2 slot: rows 32:64, col 0 = Wc2 (rows 0:32 are zero so
    # the relu'd msg/garbage lanes of the input contribute nothing).
    w_col2 = jnp.zeros((H2, H2), f32)
    w_col2 = w_col2.at[H:, 0:1].set(ped_params["Wc2"])

    ws = jnp.concatenate([w_enc2, w_proc, w_dec1, w_dec2, w_fin, w_col2],
                         axis=0).astype(jnp.bfloat16)

    def cat_b(name):
        return jnp.concatenate([ped_params[name], obs_params[name]], axis=1)

    b_fin = jnp.zeros((1, H2), f32)
    b_fin = b_fin.at[:, 0:2].set(ped_params["bpr"])
    b_fin = b_fin.at[:, 2:4].set(obs_params["bpr"])
    b_fin = b_fin.at[:, H:].set(ped_params["bc1"])
    b_col2 = jnp.zeros((1, H2), f32)
    b_col2 = b_col2.at[:, 0:1].set(ped_params["bc2"])

    b = jnp.concatenate([cat_b("be1"), cat_b("be2"), cat_b("bp"),
                         cat_b("bd1"), cat_b("bd2"), b_fin, b_col2],
                        axis=0).astype(f32)

    return w1.astype(jnp.bfloat16), ws, b, d_in


# ----------------------------------------------------------------------------
# fused kernel (built per static (K1, K2, tn, out widths))
# ----------------------------------------------------------------------------
def _make_kernel(K1, K2, tn, out_w, out_w_pad):
    K = K1 + K2

    def kernel(x_ref, self_ref, w1_ref, ws_ref, b_ref, out_ref):
        f32 = jnp.float32
        bf16 = jnp.bfloat16

        def mm(a, w):
            # bf16 MXU operands, f32 accumulation (v5e-safe).
            return jnp.dot(a.astype(bf16), w, preferred_element_type=f32)

        def wslot(j):              # sublane slice of the packed weight slab
            return ws_ref[j * H2:(j + 1) * H2, :]

        def brow(j):               # one bias row, broadcast over agents
            return b_ref[j:j + 1, :]

        # neighbour-major rows: (K, tn, d_in) -> (K*tn, d_in), layout-preserving
        x = x_ref[...].reshape(K * tn, x_ref.shape[2])

        # fused 64-wide chain (ped lanes 0:32, obs lanes 32:64; the off-branch
        # half of every row is finite garbage that block-diagonal weights never
        # mix back into the valid half).
        h = jnp.maximum(mm(x, w1_ref[...]) + brow(0), 0.0)       # encoder L1 + ReLU
        h = mm(h, wslot(0)) + brow(1)                            # encoder L2
        h = jnp.maximum(mm(h, wslot(1)) + brow(2), 0.0) + h      # processor ResBlock
        d = jnp.maximum(mm(h, wslot(2)) + brow(3), 0.0)          # decoder L1 + ReLU
        d = mm(d, wslot(3)) + brow(4)                            # decoder L2
        f = mm(d, wslot(4)) + brow(5)                            # predictor | collision L1

        ped_msgs = [f[i * tn:(i + 1) * tn, 0:2] for i in range(K1)]
        obs_msgs = [f[(K1 + j) * tn:(K1 + j + 1) * tn, 2:4] for j in range(K2)]

        acc = ped_msgs[0]
        for m in ped_msgs[1:]:
            acc = acc + m                                        # cheap VPU adds
        for m in obs_msgs:
            acc = acc + m

        # collision head layer 2 (ped rows only; rows 0:K1*tn is a free
        # sublane slice). Msg lanes hit zero weight rows, so the relu over the
        # full 64 lanes is harmless.
        g = jnp.maximum(f[0:K1 * tn, :], 0.0)
        c = mm(g, wslot(5)) + brow(6)                            # col 0 is real
        colls = [jax.nn.sigmoid(c[i * tn:(i + 1) * tn, 0:1]) for i in range(K1)]

        # social-force goal attraction (rsqrt on EUP; zero-distance guard
        # matches torch: dxy == 0 there, so any finite inverse gives 0).
        sf = self_ref[...]
        dxy = sf[:, 0:2]
        vel = sf[:, 2:4]
        desired = sf[:, 6:7]
        sq = jnp.sum(dxy * dxy, axis=-1, keepdims=True)
        inv = jnp.where(sq == 0.0, 10.0, jax.lax.rsqrt(sq))
        pred = acc + (desired * (dxy * inv) - vel) * (1.0 / TAU)

        # single lane-dense 128-wide store:
        # [pred(2) | ped_msgs(2*K1) | obs_msgs(2*K2) | collision(K1) | 0-pad]
        pieces = [pred] + ped_msgs + obs_msgs + colls
        if out_w_pad > out_w:
            pieces.append(jnp.zeros((tn, out_w_pad - out_w), f32))
        out_ref[...] = jnp.concatenate(pieces, axis=1)

    return kernel


# ----------------------------------------------------------------------------
# wrapper: layout, padding, pallas_call
# ----------------------------------------------------------------------------
def pinnsf_forward(ped_features, obs_features, self_features, ped_params, obs_params):
    N, K1, PD = ped_features.shape
    _, K2, OD = obs_features.shape
    SD = self_features.shape[1]
    K = K1 + K2

    tn, n_pad = _choose_tile(N, _min_grid_steps())
    pad_n = n_pad - N

    w1, ws, b, d_in = pack_params(ped_params, obs_params, PD, OD)

    # neighbour-major (K, N, d_in): a grid block is (K, tn, d_in); ped
    # neighbours first, obs neighbours after (row-stacked branch fusion).
    def to_nm(x):
        x = jnp.transpose(x.astype(jnp.float32), (1, 0, 2))
        return jnp.pad(x, ((0, 0), (0, pad_n), (0, d_in - x.shape[2])))

    x = jnp.concatenate([to_nm(ped_features), to_nm(obs_features)], axis=0)
    self_p = jnp.pad(self_features.astype(jnp.float32), ((0, pad_n), (0, 0)))

    out_w = 2 + 2 * K1 + 2 * K2 + K1
    out_w_pad = _round_up(out_w, 128)

    kernel = _make_kernel(K1, K2, tn, out_w, out_w_pad)
    const = lambda i: (0, 0)

    out = pl.pallas_call(
        kernel,
        out_shape=jax.ShapeDtypeStruct((n_pad, out_w_pad), jnp.float32),
        grid=(n_pad // tn,),
        in_specs=[
            pl.BlockSpec((K, tn, d_in), lambda i: (0, i, 0)),
            pl.BlockSpec((tn, SD), lambda i: (i, 0)),
            pl.BlockSpec(w1.shape, const),
            pl.BlockSpec(ws.shape, const),
            pl.BlockSpec(b.shape, const),
        ],
        out_specs=pl.BlockSpec((tn, out_w_pad), lambda i: (i, 0)),
        compiler_params=pltpu.CompilerParams(
            dimension_semantics=("parallel",),
            vmem_limit_bytes=32 * 1024 * 1024,
        ),
    )(x, self_p, w1, ws, b)

    out = out[:N]
    predictions = out[:, 0:2]
    ped_msgs = out[:, 2:2 + 2 * K1].reshape(N, K1, 2)
    obs_msgs = out[:, 2 + 2 * K1:2 + 2 * K1 + 2 * K2].reshape(N, K2, 2)
    pred_collision = out[:, 2 + 2 * K1 + 2 * K2:out_w]
    return predictions, ped_msgs, obs_msgs, pred_collision


# ----------------------------------------------------------------------------
# deterministic synthetic parameters (not a checkpoint)
# ----------------------------------------------------------------------------
def init_linear(key, fan_in, fan_out, scale=0.1):
    kw, kb = jax.random.split(key)
    w = scale * jax.random.normal(kw, (fan_in, fan_out), jnp.float32)
    b = scale * jax.random.normal(kb, (1, fan_out), jnp.float32)
    return w, b


def init_branch(key, in_dim, with_collision):
    keys = jax.random.split(key, 8)
    p = {}
    p["We1"], p["be1"] = init_linear(keys[0], in_dim, H)   # encoder layer 1
    p["We2"], p["be2"] = init_linear(keys[1], H, H)        # encoder layer 2
    p["Wp"],  p["bp"]  = init_linear(keys[2], H, H)        # processor ResBlock
    p["Wd1"], p["bd1"] = init_linear(keys[3], H, H)        # decoder layer 1
    p["Wd2"], p["bd2"] = init_linear(keys[4], H, H)        # decoder layer 2
    p["Wpr"], p["bpr"] = init_linear(keys[5], H, 2)        # predictor
    if with_collision:
        p["Wc1"], p["bc1"] = init_linear(keys[6], H, H)    # collision head 1
        p["Wc2"], p["bc2"] = init_linear(keys[7], H, 1)    # collision head 2
    return p


# ----------------------------------------------------------------------------
# pure-JAX reference (mirrors the PyTorch forward; same bf16 MXU operands)
# ----------------------------------------------------------------------------
def _mm_bf16(a, w):
    return jnp.dot(a.astype(jnp.bfloat16), w.astype(jnp.bfloat16),
                   preferred_element_type=jnp.float32)


def reference_forward(ped_features, obs_features, self_features, ped_params, obs_params):
    def branch(x, p):
        h = jnp.maximum(_mm_bf16(x, p["We1"]) + p["be1"], 0.0)
        h = _mm_bf16(h, p["We2"]) + p["be2"]
        h = jnp.maximum(_mm_bf16(h, p["Wp"]) + p["bp"], 0.0) + h
        d = jnp.maximum(_mm_bf16(h, p["Wd1"]) + p["bd1"], 0.0)
        d = _mm_bf16(d, p["Wd2"]) + p["bd2"]
        m = _mm_bf16(d, p["Wpr"]) + p["bpr"]
        return d, m

    d_ped, ped_msgs = branch(ped_features, ped_params)
    _, obs_msgs = branch(obs_features, obs_params)
    pred_acc = jnp.sum(ped_msgs, axis=-2) + jnp.sum(obs_msgs, axis=-2)

    desired_speed = self_features[..., -1:]
    temp = jnp.linalg.norm(self_features[..., :2], axis=-1, keepdims=True)
    temp_safe = jnp.where(temp == 0.0, 0.1, temp)
    dest_dir = self_features[..., :2] / temp_safe
    pred_acc_dest = (desired_speed * dest_dir - self_features[..., 2:4]) / TAU
    predictions = pred_acc + pred_acc_dest

    c = jnp.maximum(_mm_bf16(d_ped, ped_params["Wc1"]) + ped_params["bc1"], 0.0)
    c = _mm_bf16(c, ped_params["Wc2"]) + ped_params["bc2"]
    pred_collision = jax.nn.sigmoid(c)[..., 0]
    return predictions, ped_msgs, obs_msgs, pred_collision


if __name__ == "__main__":
    N, K1, K2 = 16, 4, 3
    PED_D, OBS_D, SELF_D = 4, 6, 7   # obs encoder input is hard-coded to 6 in the module

    key = jax.random.PRNGKey(0)
    k_data, k_ped, k_obs = jax.random.split(key, 3)
    ped_features = jax.random.normal(jax.random.fold_in(k_data, 0), (N, K1, PED_D), jnp.float32)
    obs_features = jax.random.normal(jax.random.fold_in(k_data, 1), (N, K2, OBS_D), jnp.float32)
    self_features = jax.random.normal(jax.random.fold_in(k_data, 2), (N, SELF_D), jnp.float32)

    ped_params = init_branch(k_ped, PED_D, with_collision=True)
    obs_params = init_branch(k_obs, OBS_D, with_collision=False)

    # TODO(synk): dropout layers are inert (dropout=0 / eval mode), so not implemented.
    fwd = jax.jit(pinnsf_forward)
    outs = fwd(ped_features, obs_features, self_features, ped_params, obs_params)
    jax.block_until_ready(outs)

    refs = reference_forward(ped_features, obs_features, self_features, ped_params, obs_params)

    for name, got, want in zip(
            ("predictions", "ped_msgs", "obs_msgs", "pred_collision"), outs, refs):
        np.testing.assert_allclose(np.asarray(got), np.asarray(want),
                                   rtol=1e-3, atol=1e-3, err_msg=name)

    print("KERNEL_OK")
</pallas_src>

<mosaic_0001>
module attributes {stable_mosaic.version = 11 : i64} {
  func.func @kernel(%arg0: i32, %arg1: memref<7x16x8xf32, #tpu.memory_space<vmem>>, %arg2: memref<16x7xf32, #tpu.memory_space<vmem>>, %arg3: memref<8x64xbf16, #tpu.memory_space<vmem>>, %arg4: memref<384x64xbf16, #tpu.memory_space<vmem>>, %arg5: memref<7x64xf32, #tpu.memory_space<vmem>>, %arg6: memref<16x128xf32, #tpu.memory_space<vmem>>) attributes {dimension_semantics = [#tpu.dimension_semantics<parallel>], iteration_bounds = array<i64: 1>, scalar_prefetch = 0 : i64, scratch_operands = 0 : i64, tpu.core_type = #tpu.core_type<tc>, window_params = [{transform_indices = @transform_0, window_bounds = array<i64: 7, 16, 8>}, {transform_indices = @transform_1, window_bounds = array<i64: 16, 7>}, {pipeline_mode = #tpu.pipeline_mode<synchronous>, transform_indices = @transform_2, window_bounds = array<i64: 8, 64>}, {pipeline_mode = #tpu.pipeline_mode<synchronous>, transform_indices = @transform_3, window_bounds = array<i64: 384, 64>}, {pipeline_mode = #tpu.pipeline_mode<synchronous>, transform_indices = @transform_4, window_bounds = array<i64: 7, 64>}, {transform_indices = @transform_5, window_bounds = array<i64: 16, 128>}]} {
    %c0 = arith.constant 0 : index
    %c0_0 = arith.constant 0 : index
    %c0_1 = arith.constant 0 : index
    %0 = vector.load %arg1[%c0, %c0_0, %c0_1] : memref<7x16x8xf32, #tpu.memory_space<vmem>>, vector<7x16x8xf32>
    %1 = vector.shape_cast %0 : vector<7x16x8xf32> to vector<112x8xf32>
    %c0_2 = arith.constant 0 : index
    %c0_3 = arith.constant 0 : index
    %2 = vector.load %arg3[%c0_2, %c0_3] : memref<8x64xbf16, #tpu.memory_space<vmem>>, vector<8x64xbf16>
    %3 = arith.truncf %1 : vector<112x8xf32> to vector<112x8xbf16>
    %cst = arith.constant dense<0.000000e+00> : vector<112x64xf32>
    %4 = tpu.matmul %3, %2, %cst {dimension_numbers = #tpu.dot_dimension_numbers<[1], [0], [0], [1], [0, 0, 1, 1], [], []>} : vector<112x8xbf16>, vector<8x64xbf16>, vector<112x64xf32> -> vector<112x64xf32>
    %c0_4 = arith.constant 0 : index
    %c0_5 = arith.constant 0 : index
    %5 = vector.load %arg5[%c0_4, %c0_5] : memref<7x64xf32, #tpu.memory_space<vmem>>, vector<1x64xf32>
    %6 = vector.broadcast %5 : vector<1x64xf32> to vector<112x64xf32>
    %7 = arith.addf %4, %6 : vector<112x64xf32>
    %cst_6 = arith.constant 0.000000e+00 : f32
    %8 = vector.broadcast %cst_6 : f32 to vector<112x64xf32>
    %9 = arith.maximumf %7, %8 : vector<112x64xf32>
    %c0_7 = arith.constant 0 : index
    %c0_8 = arith.constant 0 : index
    %10 = vector.load %arg4[%c0_7, %c0_8] : memref<384x64xbf16, #tpu.memory_space<vmem>>, vector<64x64xbf16>
    %11 = arith.truncf %9 : vector<112x64xf32> to vector<112x64xbf16>
    %cst_9 = arith.constant dense<0.000000e+00> : vector<112x64xf32>
    %12 = tpu.matmul %11, %10, %cst_9 {dimension_numbers = #tpu.dot_dimension_numbers<[1], [0], [0], [1], [0, 0, 1, 1], [], []>} : vector<112x64xbf16>, vector<64x64xbf16>, vector<112x64xf32> -> vector<112x64xf32>
    %c1 = arith.constant 1 : index
    %c0_10 = arith.constant 0 : index
    %13 = vector.load %arg5[%c1, %c0_10] : memref<7x64xf32, #tpu.memory_space<vmem>>, vector<1x64xf32>
    %14 = vector.broadcast %13 : vector<1x64xf32> to vector<112x64xf32>
    %15 = arith.addf %12, %14 : vector<112x64xf32>
    %c64 = arith.constant 64 : index
    %c0_11 = arith.constant 0 : index
    %16 = vector.load %arg4[%c64, %c0_11] : memref<384x64xbf16, #tpu.memory_space<vmem>>, vector<64x64xbf16>
    %17 = arith.truncf %15 : vector<112x64xf32> to vector<112x64xbf16>
    %cst_12 = arith.constant dense<0.000000e+00> : vector<112x64xf32>
    %18 = tpu.matmul %17, %16, %cst_12 {dimension_numbers = #tpu.dot_dimension_numbers<[1], [0], [0], [1], [0, 0, 1, 1], [], []>} : vector<112x64xbf16>, vector<64x64xbf16>, vector<112x64xf32> -> vector<112x64xf32>
    %c2 = arith.constant 2 : index
    %c0_13 = arith.constant 0 : index
    %19 = vector.load %arg5[%c2, %c0_13] : memref<7x64xf32, #tpu.memory_space<vmem>>, vector<1x64xf32>
    %20 = vector.broadcast %19 : vector<1x64xf32> to vector<112x64xf32>
    %21 = arith.addf %18, %20 : vector<112x64xf32>
    %cst_14 = arith.constant 0.000000e+00 : f32
    %22 = vector.broadcast %cst_14 : f32 to vector<112x64xf32>
    %23 = arith.maximumf %21, %22 : vector<112x64xf32>
    %24 = arith.addf %23, %15 : vector<112x64xf32>
    %c128 = arith.constant 128 : index
    %c0_15 = arith.constant 0 : index
    %25 = vector.load %arg4[%c128, %c0_15] : memref<384x64xbf16, #tpu.memory_space<vmem>>, vector<64x64xbf16>
    %26 = arith.truncf %24 : vector<112x64xf32> to vector<112x64xbf16>
    %cst_16 = arith.constant dense<0.000000e+00> : vector<112x64xf32>
    %27 = tpu.matmul %26, %25, %cst_16 {dimension_numbers = #tpu.dot_dimension_numbers<[1], [0], [0], [1], [0, 0, 1, 1], [], []>} : vector<112x64xbf16>, vector<64x64xbf16>, vector<112x64xf32> -> vector<112x64xf32>
    %c3 = arith.constant 3 : index
    %c0_17 = arith.constant 0 : index
    %28 = vector.load %arg5[%c3, %c0_17] : memref<7x64xf32, #tpu.memory_space<vmem>>, vector<1x64xf32>
    %29 = vector.broadcast %28 : vector<1x64xf32> to vector<112x64xf32>
    %30 = arith.addf %27, %29 : vector<112x64xf32>
    %cst_18 = arith.constant 0.000000e+00 : f32
    %31 = vector.broadcast %cst_18 : f32 to vector<112x64xf32>
    %32 = arith.maximumf %30, %31 : vector<112x64xf32>
    %c192 = arith.constant 192 : index
    %c0_19 = arith.constant 0 : index
    %33 = vector.load %arg4[%c192, %c0_19] : memref<384x64xbf16, #tpu.memory_space<vmem>>, vector<64x64xbf16>
    %34 = arith.truncf %32 : vector<112x64xf32> to vector<112x64xbf16>
    %cst_20 = arith.constant dense<0.000000e+00> : vector<112x64xf32>
    %35 = tpu.matmul %34, %33, %cst_20 {dimension_numbers = #tpu.dot_dimension_numbers<[1], [0], [0], [1], [0, 0, 1, 1], [], []>} : vector<112x64xbf16>, vector<64x64xbf16>, vector<112x64xf32> -> vector<112x64xf32>
    %c4 = arith.constant 4 : index
    %c0_21 = arith.constant 0 : index
    %36 = vector.load %arg5[%c4, %c0_21] : memref<7x64xf32, #tpu.memory_space<vmem>>, vector<1x64xf32>
    %37 = vector.broadcast %36 : vector<1x64xf32> to vector<112x64xf32>
    %38 = arith.addf %35, %37 : vector<112x64xf32>
    %c256 = arith.constant 256 : index
    %c0_22 = arith.constant 0 : index
    %39 = vector.load %arg4[%c256, %c0_22] : memref<384x64xbf16, #tpu.memory_space<vmem>>, vector<64x64xbf16>
    %40 = arith.truncf %38 : vector<112x64xf32> to vector<112x64xbf16>
    %cst_23 = arith.constant dense<0.000000e+00> : vector<112x64xf32>
    %41 = tpu.matmul %40, %39, %cst_23 {dimension_numbers = #tpu.dot_dimension_numbers<[1], [0], [0], [1], [0, 0, 1, 1], [], []>} : vector<112x64xbf16>, vector<64x64xbf16>, vector<112x64xf32> -> vector<112x64xf32>
    %c5 = arith.constant 5 : index
    %c0_24 = arith.constant 0 : index
    %42 = vector.load %arg5[%c5, %c0_24] : memref<7x64xf32, #tpu.memory_space<vmem>>, vector<1x64xf32>
    %43 = vector.broadcast %42 : vector<1x64xf32> to vector<112x64xf32>
    %44 = arith.addf %41, %43 : vector<112x64xf32>
    %45 = vector.extract_strided_slice %44 {offsets = [0, 0], sizes = [16, 2], strides = [1, 1]} : vector<112x64xf32> to vector<16x2xf32>
    %46 = vector.extract_strided_slice %44 {offsets = [16, 0], sizes = [16, 2], strides = [1, 1]} : vector<112x64xf32> to vector<16x2xf32>
    %47 = vector.extract_strided_slice %44 {offsets = [32, 0], sizes = [16, 2], strides = [1, 1]} : vector<112x64xf32> to vector<16x2xf32>
    %48 = vector.extract_strided_slice %44 {offsets = [48, 0], sizes = [16, 2], strides = [1, 1]} : vector<112x64xf32> to vector<16x2xf32>
    %49 = vector.extract_strided_slice %44 {offsets = [64, 2], sizes = [16, 2], strides = [1, 1]} : vector<112x64xf32> to vector<16x2xf32>
    %50 = vector.extract_strided_slice %44 {offsets = [80, 2], sizes = [16, 2], strides = [1, 1]} : vector<112x64xf32> to vector<16x2xf32>
    %51 = vector.extract_strided_slice %44 {offsets = [96, 2], sizes = [16, 2], strides = [1, 1]} : vector<112x64xf32> to vector<16x2xf32>
    %52 = arith.addf %45, %46 : vector<16x2xf32>
    %53 = arith.addf %52, %47 : vector<16x2xf32>
    %54 = arith.addf %53, %48 : vector<16x2xf32>
    %55 = arith.addf %54, %49 : vector<16x2xf32>
    %56 = arith.addf %55, %50 : vector<16x2xf32>
    %57 = arith.addf %56, %51 : vector<16x2xf32>
    %58 = vector.extract_strided_slice %44 {offsets = [0, 0], sizes = [64, 64], strides = [1, 1]} : vector<112x64xf32> to vector<64x64xf32>
    %cst_25 = arith.constant 0.000000e+00 : f32
    %59 = vector.broadcast %cst_25 : f32 to vector<64x64xf32>
    %60 = arith.maximumf %58, %59 : vector<64x64xf32>
    %c320 = arith.constant 320 : index
    %c0_26 = arith.constant 0 : index
    %61 = vector.load %arg4[%c320, %c0_26] : memref<384x64xbf16, #tpu.memory_space<vmem>>, vector<64x64xbf16>
    %62 = arith.truncf %60 : vector<64x64xf32> to vector<64x64xbf16>
    %cst_27 = arith.constant dense<0.000000e+00> : vector<64x64xf32>
    %63 = tpu.matmul %62, %61, %cst_27 {dimension_numbers = #tpu.dot_dimension_numbers<[1], [0], [0], [1], [0, 0, 1, 1], [], []>} : vector<64x64xbf16>, vector<64x64xbf16>, vector<64x64xf32> -> vector<64x64xf32>
    %c6 = arith.constant 6 : index
    %c0_28 = arith.constant 0 : index
    %64 = vector.load %arg5[%c6, %c0_28] : memref<7x64xf32, #tpu.memory_space<vmem>>, vector<1x64xf32>
    %65 = vector.broadcast %64 : vector<1x64xf32> to vector<64x64xf32>
    %66 = arith.addf %63, %65 : vector<64x64xf32>
    %67 = vector.extract_strided_slice %66 {offsets = [0, 0], sizes = [16, 1], strides = [1, 1]} : vector<64x64xf32> to vector<16x1xf32>
    %68 = arith.negf %67 : vector<16x1xf32>
    %69 = math.exp %68 : vector<16x1xf32>
    %cst_29 = arith.constant 1.000000e+00 : f32
    %70 = vector.broadcast %cst_29 : f32 to vector<16x1xf32>
    %71 = arith.addf %70, %69 : vector<16x1xf32>
    %72 = arith.divf %70, %71 : vector<16x1xf32>
    %73 = vector.extract_strided_slice %66 {offsets = [16, 0], sizes = [16, 1], strides = [1, 1]} : vector<64x64xf32> to vector<16x1xf32>
    %74 = arith.negf %73 : vector<16x1xf32>
    %75 = math.exp %74 : vector<16x1xf32>
    %cst_30 = arith.constant 1.000000e+00 : f32
    %76 = vector.broadcast %cst_30 : f32 to vector<16x1xf32>
    %77 = arith.addf %76, %75 : vector<16x1xf32>
    %78 = arith.divf %76, %77 : vector<16x1xf32>
    %79 = vector.extract_strided_slice %66 {offsets = [32, 0], sizes = [16, 1], strides = [1, 1]} : vector<64x64xf32> to vector<16x1xf32>
    %80 = arith.negf %79 : vector<16x1xf32>
    %81 = math.exp %80 : vector<16x1xf32>
    %cst_31 = arith.constant 1.000000e+00 : f32
    %82 = vector.broadcast %cst_31 : f32 to vector<16x1xf32>
    %83 = arith.addf %82, %81 : vector<16x1xf32>
    %84 = arith.divf %82, %83 : vector<16x1xf32>
    %85 = vector.extract_strided_slice %66 {offsets = [48, 0], sizes = [16, 1], strides = [1, 1]} : vector<64x64xf32> to vector<16x1xf32>
    %86 = arith.negf %85 : vector<16x1xf32>
    %87 = math.exp %86 : vector<16x1xf32>
    %cst_32 = arith.constant 1.000000e+00 : f32
    %88 = vector.broadcast %cst_32 : f32 to vector<16x1xf32>
    %89 = arith.addf %88, %87 : vector<16x1xf32>
    %90 = arith.divf %88, %89 : vector<16x1xf32>
    %c0_33 = arith.constant 0 : index
    %c0_34 = arith.constant 0 : index
    %91 = vector.load %arg2[%c0_33, %c0_34] : memref<16x7xf32, #tpu.memory_space<vmem>>, vector<16x7xf32>
    %92 = vector.extract_strided_slice %91 {offsets = [0, 0], sizes = [16, 2], strides = [1, 1]} : vector<16x7xf32> to vector<16x2xf32>
    %93 = vector.extract_strided_slice %91 {offsets = [0, 2], sizes = [16, 2], strides = [1, 1]} : vector<16x7xf32> to vector<16x2xf32>
    %94 = vector.extract_strided_slice %91 {offsets = [0, 6], sizes = [16, 1], strides = [1, 1]} : vector<16x7xf32> to vector<16x1xf32>
    %95 = arith.mulf %92, %92 : vector<16x2xf32>
    %cst_35 = arith.constant dense<0.000000e+00> : vector<16xf32>
    %96 = vector.multi_reduction <add>, %95, %cst_35 [1] : vector<16x2xf32> to vector<16xf32>
    %97 = vector.shape_cast %96 : vector<16xf32> to vector<16x1xf32>
    %cst_36 = arith.constant 0.000000e+00 : f32
    %98 = vector.broadcast %cst_36 : f32 to vector<16x1xf32>
    %99 = arith.cmpf oeq, %97, %98 : vector<16x1xf32>
    %100 = math.rsqrt %97 : vector<16x1xf32>
    %cst_37 = arith.constant 1.000000e+01 : f32
    %101 = vector.broadcast %cst_37 : f32 to vector<16x1xf32>
    %102 = arith.select %99, %101, %100 : vector<16x1xi1>, vector<16x1xf32>
    %103 = vector.broadcast %102 : vector<16x1xf32> to vector<16x2xf32>
    %104 = arith.mulf %92, %103 : vector<16x2xf32>
    %105 = vector.broadcast %94 : vector<16x1xf32> to vector<16x2xf32>
    %106 = arith.mulf %105, %104 : vector<16x2xf32>
    %107 = arith.subf %106, %93 : vector<16x2xf32>
    %cst_38 = arith.constant 5.000000e-01 : f32
    %108 = vector.broadcast %cst_38 : f32 to vector<16x2xf32>
    %109 = arith.mulf %107, %108 : vector<16x2xf32>
    %110 = arith.addf %57, %109 : vector<16x2xf32>
    %cst_39 = arith.constant 0.000000e+00 : f32
    %111 = vector.broadcast %cst_39 : f32 to vector<16x108xf32>
    %112 = tpu.concatenate %110, %45, %46, %47, %48, %49, %50, %51, %72, %78, %84, %90, %111 in 1 : vector<16x2xf32>, vector<16x2xf32>, vector<16x2xf32>, vector<16x2xf32>, vector<16x2xf32>, vector<16x2xf32>, vector<16x2xf32>, vector<16x2xf32>, vector<16x1xf32>, vector<16x1xf32>, vector<16x1xf32>, vector<16x1xf32>, vector<16x108xf32> -> vector<16x128xf32>
    %c0_40 = arith.constant 0 : index
    %c0_41 = arith.constant 0 : index
    %113 = vector.load %arg6[%c0_40, %c0_41] : memref<16x128xf32, #tpu.memory_space<vmem>>, vector<16x128xf32>
    tpu.vector_store %arg6[%c0_40, %c0_41], %112 {strides = array<i32>} : memref<16x128xf32, #tpu.memory_space<vmem>>, vector<16x128xf32>,
    return
  }
  func.func @transform_0(%arg0: i32) -> (i32, i32, i32) {
    %c0_i32 = arith.constant 0 : i32
    %c0_i32_0 = arith.constant 0 : i32
    %c0_i32_1 = arith.constant 0 : i32
    return %c0_i32, %arg0, %c0_i32_0 : i32, i32, i32
  }
  func.func @transform_1(%arg0: i32) -> (i32, i32) {
    %c0_i32 = arith.constant 0 : i32
    %c0_i32_0 = arith.constant 0 : i32
    return %arg0, %c0_i32 : i32, i32
  }
  func.func @transform_2(%arg0: i32) -> (i32, i32) {
    %c0_i32 = arith.constant 0 : i32
    %c0_i32_0 = arith.constant 0 : i32
    %c0_i32_1 = arith.constant 0 : i32
    return %c0_i32, %c0_i32_0 : i32, i32
  }
  func.func @transform_3(%arg0: i32) -> (i32, i32) {
    %c0_i32 = arith.constant 0 : i32
    %c0_i32_0 = arith.constant 0 : i32
    %c0_i32_1 = arith.constant 0 : i32
    return %c0_i32, %c0_i32_0 : i32, i32
  }
  func.func @transform_4(%arg0: i32) -> (i32, i32) {
    %c0_i32 = arith.constant 0 : i32
    %c0_i32_0 = arith.constant 0 : i32
    %c0_i32_1 = arith.constant 0 : i32
    return %c0_i32, %c0_i32_0 : i32, i32
  }
  func.func @transform_5(%arg0: i32) -> (i32, i32) {
    %c0_i32 = arith.constant 0 : i32
    %c0_i32_0 = arith.constant 0 : i32
    return %arg0, %c0_i32 : i32, i32
  }
}

</mosaic_0001>

<llo_original>
// kernel: pinnsf_forward.1
$region0: #{pinnsf_forward.1}
  #allocation0 [shape = 'u32[]', space=smem, size = 0x4, offset = 0x4, fixed_abs, tag = 'smem constant byte address 0x4 - core index']
  #allocation1 [shape = 'u32[144,128]{1,0:T(1,128)}', space=vmem, size = 0x12000, scoped, tag = 'internal scratch']
  %s0 = inlined_call_operand.vmem [shape: f32[7,16,8], index: 0, kind: input, shape index: {}]
  %s1 = inlined_call_operand.vmem [shape: f32[16,7], index: 1, kind: input, shape index: {}]
  %s2 = inlined_call_operand.vmem [shape: bf16[8,64], index: 2, kind: input, shape index: {}]
  %s3 = inlined_call_operand.vmem [shape: bf16[384,64], index: 3, kind: input, shape index: {}]
  %s4 = inlined_call_operand.vmem [shape: f32[7,64], index: 4, kind: input, shape index: {}]
  %s5 = inlined_call_operand.vmem [shape: f32[16,128], index: 5, kind: output, shape index: {}]
  %s6 = sld [smem:[#allocation0]]
  $region30: #{pinnsf_forward.1} parent=0
    _
  %s8 = ssub.s32 1, %s6
  %s9 = scalar_select 0, %s8, %s6
  // Predicated region
  $region2: #{pinnsf_forward.1} parent=0 // pred_check
    _
  $region3: #{pinnsf_forward.1} parent=0 // pred_check_branch
    %11 = sbr.rel (0) target = $region5
  $region4: #{pinnsf_forward.1} parent=0 // pred_region
    _
  $region5: #{pinnsf_forward.1} parent=0 // pred_fallthru
    _
  // Predicated region
  $region6: #{pinnsf_forward.1} parent=0 // pred_check
    _
  $region7: #{pinnsf_forward.1} parent=0 // pred_check_branch
    %13 = sbr.rel (0) target = $region9
  $region8: #{pinnsf_forward.1} parent=0 // pred_region
    _
  $region9: #{pinnsf_forward.1} parent=0 // pred_fallthru
    _
  // Predicated region
  $region10: #{pinnsf_forward.1} parent=0 // pred_check
    _
  $region11: #{pinnsf_forward.1} parent=0 // pred_check_branch
    %15 = sbr.rel (0) target = $region13
  $region12: #{pinnsf_forward.1} parent=0 // pred_region
    _
  $region13: #{pinnsf_forward.1} parent=0 // pred_fallthru
    _
  // Predicated region
  $region14: #{pinnsf_forward.1} parent=0 // pred_check
    _
  $region15: #{pinnsf_forward.1} parent=0 // pred_check_branch
    %17 = sbr.rel (0) target = $region17
  $region16: #{pinnsf_forward.1} parent=0 // pred_region
    _
  $region17: #{pinnsf_forward.1} parent=0 // pred_fallthru
    _
  // Predicated region
  $region18: #{pinnsf_forward.1} parent=0 // pred_check
    _
  $region19: #{pinnsf_forward.1} parent=0 // pred_check_branch
    %19 = sbr.rel (0) target = $region21
  $region20: #{pinnsf_forward.1} parent=0 // pred_region
    _
  $region21: #{pinnsf_forward.1} parent=0 // pred_fallthru
    _
  %v21 = vld [vmem:[%s0] sm:$0xff]
  %v22 = vld [vmem:[%s0 + $0x8] sm:$0xff]
  %v23 = vld [vmem:[%s0 + $0x10] sm:$0xff]
  %v24 = vld [vmem:[%s0 + $0x18] sm:$0xff]
  %v25 = vld [vmem:[%s0 + $0x20] sm:$0xff]
  %v26 = vld [vmem:[%s0 + $0x28] sm:$0xff]
  %v27 = vld [vmem:[%s0 + $0x30] sm:$0xff]
  %v28 = vld [vmem:[%s0 + $0x38] sm:$0xff]
  %v29 = vld [vmem:[%s0 + $0x40] sm:$0xff]
  %v30 = vld [vmem:[%s0 + $0x48] sm:$0xff]
  %v31 = vld [vmem:[%s0 + $0x50] sm:$0xff]
  %v32 = vld [vmem:[%s0 + $0x58] sm:$0xff]
  %v33 = vld [vmem:[%s0 + $0x60] sm:$0xff]
  %v34 = vld [vmem:[%s0 + $0x68] sm:$0xff]
  %v35 = vld [vmem:[%s2] sm:$0xf]
  %v36 = vpack.c.bf16 %v22, %v21
  %v37 = vpack.c.bf16 %v24, %v23
  %v38 = vpack.c.bf16 %v26, %v25
  %v39 = vpack.c.bf16 %v28, %v27
  %v40 = vpack.c.bf16 %v30, %v29
  %v41 = vpack.c.bf16 %v32, %v31
  %v42 = vpack.c.bf16 %v34, %v33
  %v43 = vld [vmem:[%s4] sm:$0x1]
  %v44 = vlaneseq
  %v45 = vshrl.u32 %v44, 7
  %v46 = vsub.s32 0, %v45
  %v47 = vrot.slane %v43, %v46
  %vm48 = vcmask 64512
  %v50 = vsel %vm48, %v36, 0
  %v53 = vsel %vm48, %v37, 0
  %v56 = vsel %vm48, %v38, 0
  %v59 = vsel %vm48, %v39, 0
  %v62 = vsel %vm48, %v40, 0
  %v65 = vsel %vm48, %v41, 0
  %v68 = vsel %vm48, %v42, 0
  %vm70 = vcmask 1043456
  %v72 = vsel %vm70, %v35, 0
  %74 = vmatprep.subr.bf16.mxu0 0
  %75 = vmatpush1.bf16.msra.mxu0 %v72
  %76 = vmatprep.subr.bf16.mxu0 0
  %77 = vmatpush1.bf16.msra.mxu0 0
  %78 = vmatprep.subr.bf16.mxu0 0
  %79 = vmatpush1.bf16.msra.mxu0 0
  %80 = vmatprep.subr.bf16.mxu0 0
  %81 = vmatpush1.bf16.msra.mxu0 0
  %82 = vmatprep.subr.bf16.mxu0 0
  %83 = vmatpush1.bf16.msra.mxu0 0
  %84 = vmatprep.subr.bf16.mxu0 0
  %85 = vmatpush1.bf16.msra.mxu0 0
  %86 = vmatprep.subr.bf16.mxu0 0
  %87 = vmatpush1.bf16.msra.mxu0 0
  %88 = vmatprep.subr.bf16.mxu0 0
  %89 = vmatpush1.bf16.msra.mxu0 0
  %90 = vmatprep.subr.bf16.mxu0 0
  %91 = vmatpush1.bf16.msra.mxu0 0
  %92 = vmatprep.subr.bf16.mxu0 0
  %93 = vmatpush1.bf16.msra.mxu0 0
  %94 = vmatprep.subr.bf16.mxu0 0
  %95 = vmatpush1.bf16.msra.mxu0 0
  %96 = vmatprep.subr.bf16.mxu0 0
  %97 = vmatpush1.bf16.msra.mxu0 0
  %98 = vmatprep.subr.bf16.mxu0 0
  %99 = vmatpush1.bf16.msra.mxu0 0
  %100 = vmatprep.subr.bf16.mxu0 0
  %101 = vmatpush1.bf16.msra.mxu0 0
  %102 = vmatprep.subr.bf16.mxu0 0
  %103 = vmatpush1.bf16.msra.mxu0 0
  %104 = vmatprep.subr.bf16.mxu0 0
  %105 = vmatpush1.bf16.msra.mxu0 0
  %106 = vmatprep.mubr.bf16.mxu0 0
  %107 = vmatmul.mubr.bf16.gmra.mrb[0].mxu0 %v50
  %v108 = vpop.f32.mrb[0].mxu0
  %v109 = vadd.f32 %v47, %v108
  %v110 = vpop.f32.mrb[0].mxu0
  %v111 = vpop.f32.mrb[0].mxu0
  %v112 = vadd.f32 %v47, %v111
  %v113 = vpop.f32.mrb[0].mxu0
  %114 = vmatprep.mubr.bf16.mxu0 0
  %115 = vmatmul.mubr.bf16.gmra.mrb[0].mxu0 %v53
  %v116 = vpop.f32.mrb[0].mxu0
  %v117 = vadd.f32 %v47, %v116
  %v118 = vpop.f32.mrb[0].mxu0
  %v119 = vpop.f32.mrb[0].mxu0
  %v120 = vadd.f32 %v47, %v119
  %v121 = vpop.f32.mrb[0].mxu0
  %122 = vmatprep.mubr.bf16.mxu0 0
  %123 = vmatmul.mubr.bf16.gmra.mrb[0].mxu0 %v56
  %v124 = vpop.f32.mrb[0].mxu0
  %v125 = vadd.f32 %v47, %v124
  %v126 = vpop.f32.mrb[0].mxu0
  %v127 = vpop.f32.mrb[0].mxu0
  %v128 = vadd.f32 %v47, %v127
  %v129 = vpop.f32.mrb[0].mxu0
  %130 = vmatprep.mubr.bf16.mxu0 0
  %131 = vmatmul.mubr.bf16.gmra.mrb[0].mxu0 %v59
  %v132 = vpop.f32.mrb[0].mxu0
  %v133 = vadd.f32 %v47, %v132
  %v134 = vpop.f32.mrb[0].mxu0
  %v135 = vpop.f32.mrb[0].mxu0
  %v136 = vadd.f32 %v47, %v135
  %v137 = vpop.f32.mrb[0].mxu0
  %138 = vmatprep.mubr.bf16.mxu0 0
  %139 = vmatmul.mubr.bf16.gmra.mrb[0].mxu0 %v62
  %v140 = vpop.f32.mrb[0].mxu0
  %v141 = vadd.f32 %v47, %v140
  %v142 = vpop.f32.mrb[0].mxu0
  %v143 = vpop.f32.mrb[0].mxu0
  %v144 = vadd.f32 %v47, %v143
  %v145 = vpop.f32.mrb[0].mxu0
  %146 = vmatprep.mubr.bf16.mxu0 0
  %147 = vmatmul.mubr.bf16.gmra.mrb[0].mxu0 %v65
  %v148 = vpop.f32.mrb[0].mxu0
  %v149 = vadd.f32 %v47, %v148
  %v150 = vpop.f32.mrb[0].mxu0
  %v151 = vpop.f32.mrb[0].mxu0
  %v152 = vadd.f32 %v47, %v151
  %v153 = vpop.f32.mrb[0].mxu0
  %154 = vmatprep.mubr.bf16.mxu0 0
  %155 = vmatmul.mubr.bf16.gmra.mrb[0].mxu0 %v68
  %v156 = vpop.f32.mrb[0].mxu0
  %v157 = vadd.f32 %v47, %v156
  %v158 = vpop.f32.mrb[0].mxu0
  %v159 = vpop.f32.mrb[0].mxu0
  %v160 = vadd.f32 %v47, %v159
  %v161 = vpop.f32.mrb[0].mxu0
  %162 = vdwg.mxu0
  %v163 = vmax.f32 %v109, 0.0
  %v164 = vmax.f32 %v112, 0.0
  %v165 = vmax.f32 %v117, 0.0
  %v166 = vmax.f32 %v120, 0.0
  %v167 = vmax.f32 %v125, 0.0
  %v168 = vmax.f32 %v128, 0.0
  %v169 = vmax.f32 %v133, 0.0
  %v170 = vmax.f32 %v136, 0.0
  %v171 = vmax.f32 %v141, 0.0
  %v172 = vmax.f32 %v144, 0.0
  %v173 = vmax.f32 %v149, 0.0
  %v174 = vmax.f32 %v152, 0.0
  %v175 = vmax.f32 %v157, 0.0
  %v176 = vmax.f32 %v160, 0.0
  %v177 = vld [vmem:[%s3] sm:$0xf]
  %v178 = vld [vmem:[%s3 + $0x4] sm:$0xf]
  %v179 = vld [vmem:[%s3 + $0x8] sm:$0xf]
  %v180 = vld [vmem:[%s3 + $0xc] sm:$0xf]
  %v181 = vld [vmem:[%s3 + $0x10] sm:$0xf]
  %v182 = vld [vmem:[%s3 + $0x14] sm:$0xf]
  %v183 = vld [vmem:[%s3 + $0x18] sm:$0xf]
  %v184 = vld [vmem:[%s3 + $0x1c] sm:$0xf]
  %v185 = vpack.c.bf16 %v164, %v163
  %v186 = vpack.c.bf16 %v166, %v165
  %v187 = vpack.c.bf16 %v168, %v167
  %v188 = vpack.c.bf16 %v170, %v169
  %v189 = vpack.c.bf16 %v172, %v171
  %v190 = vpack.c.bf16 %v174, %v173
  %v191 = vpack.c.bf16 %v176, %v175
  %v192 = vld [vmem:[%s4 + $0x1] sm:$0x1]
  %v193 = vlaneseq
  %v194 = vshrl.u32 %v193, 7
  %v195 = vsub.s32 0, %v194
  %v196 = vrot.slane %v192, %v195
  %v205 = vunpack.c.l.b16 %v177
  %v206 = vunpack.c.l.b16 %v178
  %v207 = vunpack.c.l.b16 %v179
  %v208 = vunpack.c.l.b16 %v180
  %v209 = vunpack.c.l.b16 %v181
  %v210 = vunpack.c.l.b16 %v182
  %v211 = vunpack.c.l.b16 %v183
  %v212 = vunpack.c.l.b16 %v184
  %v213 = vpack.c.b16 %v206, %v205
  %v214 = vpack.c.b16 %v208, %v207
  %v215 = vpack.c.b16 %v210, %v209
  %v216 = vpack.c.b16 %v212, %v211
  %vm221 = vcmask 523264
  %v223 = vsel %vm221, %v185, 0
  %v226 = vsel %vm221, %v186, 0
  %v229 = vsel %vm221, %v187, 0
  %v232 = vsel %vm221, %v188, 0
  %v235 = vsel %vm221, %v189, 0
  %v238 = vsel %vm221, %v190, 0
  %v241 = vsel %vm221, %v191, 0
  %243 = vmatprep.subr.bf16.mxu0 0
  %244 = vmatpush1.bf16.msra.mxu0 %v213
  %245 = vmatprep.subr.bf16.mxu0 0
  %246 = vmatpush1.bf16.msra.mxu0 %v214
  %247 = vmatprep.subr.bf16.mxu0 0
  %248 = vmatpush1.bf16.msra.mxu0 %v215
  %249 = vmatprep.subr.bf16.mxu0 0
  %250 = vmatpush1.bf16.msra.mxu0 %v216
  %251 = vmatprep.subr.bf16.mxu0 0
  %252 = vmatpush1.bf16.msra.mxu0 0
  %253 = vmatprep.subr.bf16.mxu0 0
  %254 = vmatpush1.bf16.msra.mxu0 0
  %255 = vmatprep.subr.bf16.mxu0 0
  %256 = vmatpush1.bf16.msra.mxu0 0
  %257 = vmatprep.subr.bf16.mxu0 0
  %258 = vmatpush1.bf16.msra.mxu0 0
  %259 = vmatprep.subr.bf16.mxu0 0
  %260 = vmatpush1.bf16.msra.mxu0 0
  %261 = vmatprep.subr.bf16.mxu0 0
  %262 = vmatpush1.bf16.msra.mxu0 0
  %263 = vmatprep.subr.bf16.mxu0 0
  %264 = vmatpush1.bf16.msra.mxu0 0
  %265 = vmatprep.subr.bf16.mxu0 0
  %266 = vmatpush1.bf16.msra.mxu0 0
  %267 = vmatprep.subr.bf16.mxu0 0
  %268 = vmatpush1.bf16.msra.mxu0 0
  %269 = vmatprep.subr.bf16.mxu0 0
  %270 = vmatpush1.bf16.msra.mxu0 0
  %271 = vmatprep.subr.bf16.mxu0 0
  %272 = vmatpush1.bf16.msra.mxu0 0
  %273 = vmatprep.subr.bf16.mxu0 0
  %274 = vmatpush1.bf16.msra.mxu0 0
  %275 = vmatprep.mubr.bf16.mxu0 0
  %276 = vmatmul.mubr.bf16.gmra.mrb[0].mxu0 %v223
  %v277 = vpop.f32.mrb[0].mxu0
  %v278 = vadd.f32 %v196, %v277
  %v279 = vpop.f32.mrb[0].mxu0
  %v280 = vpop.f32.mrb[0].mxu0
  %v281 = vadd.f32 %v196, %v280
  %v282 = vpop.f32.mrb[0].mxu0
  %283 = vmatprep.mubr.bf16.mxu0 0
  %284 = vmatmul.mubr.bf16.gmra.mrb[0].mxu0 %v226
  %v285 = vpop.f32.mrb[0].mxu0
  %v286 = vadd.f32 %v196, %v285
  %v287 = vpop.f32.mrb[0].mxu0
  %v288 = vpop.f32.mrb[0].mxu0
  %v289 = vadd.f32 %v196, %v288
  %v290 = vpop.f32.mrb[0].mxu0
  %291 = vmatprep.mubr.bf16.mxu0 0
  %292 = vmatmul.mubr.bf16.gmra.mrb[0].mxu0 %v229
  %v293 = vpop.f32.mrb[0].mxu0
  %v294 = vadd.f32 %v196, %v293
  %v295 = vpop.f32.mrb[0].mxu0
  %v296 = vpop.f32.mrb[0].mxu0
  %v297 = vadd.f32 %v196, %v296
  %v298 = vpop.f32.mrb[0].mxu0
  %299 = vmatprep.mubr.bf16.mxu0 0
  %300 = vmatmul.mubr.bf16.gmra.mrb[0].mxu0 %v232
  %v301 = vpop.f32.mrb[0].mxu0
  %v302 = vadd.f32 %v196, %v301
  %v303 = vpop.f32.mrb[0].mxu0
  %v304 = vpop.f32.mrb[0].mxu0
  %v305 = vadd.f32 %v196, %v304
  %v306 = vpop.f32.mrb[0].mxu0
  %307 = vmatprep.mubr.bf16.mxu0 0
  %308 = vmatmul.mubr.bf16.gmra.mrb[0].mxu0 %v235
  %v309 = vpop.f32.mrb[0].mxu0
  %v310 = vadd.f32 %v196, %v309
  %v311 = vpop.f32.mrb[0].mxu0
  %v312 = vpop.f32.mrb[0].mxu0
  %v313 = vadd.f32 %v196, %v312
  %v314 = vpop.f32.mrb[0].mxu0
  %315 = vmatprep.mubr.bf16.mxu0 0
  %316 = vmatmul.mubr.bf16.gmra.mrb[0].mxu0 %v238
  %v317 = vpop.f32.mrb[0].mxu0
  %v318 = vadd.f32 %v196, %v317
  %v319 = vpop.f32.mrb[0].mxu0
  %v320 = vpop.f32.mrb[0].mxu0
  %v321 = vadd.f32 %v196, %v320
  %v322 = vpop.f32.mrb[0].mxu0
  %323 = vmatprep.mubr.bf16.mxu0 0
  %324 = vmatmul.mubr.bf16.gmra.mrb[0].mxu0 %v241
  %v325 = vpop.f32.mrb[0].mxu0
  %v326 = vadd.f32 %v196, %v325
  %v327 = vpop.f32.mrb[0].mxu0
  %v328 = vpop.f32.mrb[0].mxu0
  %v329 = vadd.f32 %v196, %v328
  %v330 = vpop.f32.mrb[0].mxu0
  %331 = vdwg.mxu0
  %v332 = vld [vmem:[%s3 + $0x20] sm:$0xf]
  %v333 = vld [vmem:[%s3 + $0x24] sm:$0xf]
  %v334 = vld [vmem:[%s3 + $0x28] sm:$0xf]
  %v335 = vld [vmem:[%s3 + $0x2c] sm:$0xf]
  %v336 = vld [vmem:[%s3 + $0x30] sm:$0xf]
  %v337 = vld [vmem:[%s3 + $0x34] sm:$0xf]
  %v338 = vld [vmem:[%s3 + $0x38] sm:$0xf]
  %v339 = vld [vmem:[%s3 + $0x3c] sm:$0xf]
  %v340 = vpack.c.bf16 %v281, %v278
  %v341 = vpack.c.bf16 %v289, %v286
  %v342 = vpack.c.bf16 %v297, %v294
  %v343 = vpack.c.bf16 %v305, %v302
  %v344 = vpack.c.bf16 %v313, %v310
  %v345 = vpack.c.bf16 %v321, %v318
  %v346 = vpack.c.bf16 %v329, %v326
  %v347 = vld [vmem:[%s4 + $0x2] sm:$0x1]
  %v348 = vlaneseq
  %v349 = vshrl.u32 %v348, 7
  %v350 = vsub.s32 0, %v349
  %v351 = vrot.slane %v347, %v350
  %v360 = vunpack.c.l.b16 %v332
  %v361 = vunpack.c.l.b16 %v333
  %v362 = vunpack.c.l.b16 %v334
  %v363 = vunpack.c.l.b16 %v335
  %v364 = vunpack.c.l.b16 %v336
  %v365 = vunpack.c.l.b16 %v337
  %v366 = vunpack.c.l.b16 %v338
  %v367 = vunpack.c.l.b16 %v339
  %v368 = vpack.c.b16 %v361, %v360
  %v369 = vpack.c.b16 %v363, %v362
  %v370 = vpack.c.b16 %v365, %v364
  %v371 = vpack.c.b16 %v367, %v366
  %v377 = vsel %vm221, %v340, 0
  %v380 = vsel %vm221, %v341, 0
  %v383 = vsel %vm221, %v342, 0
  %v386 = vsel %vm221, %v343, 0
  %v389 = vsel %vm221, %v344, 0
  %v392 = vsel %vm221, %v345, 0
  %v395 = vsel %vm221, %v346, 0
  %397 = vmatprep.subr.bf16.mxu0 0
  %398 = vmatpush1.bf16.msra.mxu0 %v368
  %399 = vmatprep.subr.bf16.mxu0 0
  %400 = vmatpush1.bf16.msra.mxu0 %v369
  %401 = vmatprep.subr.bf16.mxu0 0
  %402 = vmatpush1.bf16.msra.mxu0 %v370
  %403 = vmatprep.subr.bf16.mxu0 0
  %404 = vmatpush1.bf16.msra.mxu0 %v371
  %405 = vmatprep.subr.bf16.mxu0 0
  %406 = vmatpush1.bf16.msra.mxu0 0
  %407 = vmatprep.subr.bf16.mxu0 0
  %408 = vmatpush1.bf16.msra.mxu0 0
  %409 = vmatprep.subr.bf16.mxu0 0
  %410 = vmatpush1.bf16.msra.mxu0 0
  %411 = vmatprep.subr.bf16.mxu0 0
  %412 = vmatpush1.bf16.msra.mxu0 0
  %413 = vmatprep.subr.bf16.mxu0 0
  %414 = vmatpush1.bf16.msra.mxu0 0
  %415 = vmatprep.subr.bf16.mxu0 0
  %416 = vmatpush1.bf16.msra.mxu0 0
  %417 = vmatprep.subr.bf16.mxu0 0
  %418 = vmatpush1.bf16.msra.mxu0 0
  %419 = vmatprep.subr.bf16.mxu0 0
  %420 = vmatpush1.bf16.msra.mxu0 0
  %421 = vmatprep.subr.bf16.mxu0 0
  %422 = vmatpush1.bf16.msra.mxu0 0
  %423 = vmatprep.subr.bf16.mxu0 0
  %424 = vmatpush1.bf16.msra.mxu0 0
  %425 = vmatprep.subr.bf16.mxu0 0
  %426 = vmatpush1.bf16.msra.mxu0 0
  %427 = vmatprep.subr.bf16.mxu0 0
  %428 = vmatpush1.bf16.msra.mxu0 0
  %429 = vmatprep.mubr.bf16.mxu0 0
  %430 = vmatmul.mubr.bf16.gmra.mrb[0].mxu0 %v377
  %v431 = vpop.f32.mrb[0].mxu0
  %v432 = vadd.f32 %v351, %v431
  %v433 = vpop.f32.mrb[0].mxu0
  %v434 = vpop.f32.mrb[0].mxu0
  %v435 = vadd.f32 %v351, %v434
  %v436 = vpop.f32.mrb[0].mxu0
  %437 = vmatprep.mubr.bf16.mxu0 0
  %438 = vmatmul.mubr.bf16.gmra.mrb[0].mxu0 %v380
  %v439 = vpop.f32.mrb[0].mxu0
  %v440 = vadd.f32 %v351, %v439
  %v441 = vpop.f32.mrb[0].mxu0
  %v442 = vpop.f32.mrb[0].mxu0
  %v443 = vadd.f32 %v351, %v442
  %v444 = vpop.f32.mrb[0].mxu0
  %445 = vmatprep.mubr.bf16.mxu0 0
  %446 = vmatmul.mubr.bf16.gmra.mrb[0].mxu0 %v383
  %v447 = vpop.f32.mrb[0].mxu0
  %v448 = vadd.f32 %v351, %v447
  %v449 = vpop.f32.mrb[0].mxu0
  %v450 = vpop.f32.mrb[0].mxu0
  %v451 = vadd.f32 %v351, %v450
  %v452 = vpop.f32.mrb[0].mxu0
  %453 = vmatprep.mubr.bf16.mxu0 0
  %454 = vmatmul.mubr.bf16.gmra.mrb[0].mxu0 %v386
  %v455 = vpop.f32.mrb[0].mxu0
  %v456 = vadd.f32 %v351, %v455
  %v457 = vpop.f32.mrb[0].mxu0
  %v458 = vpop.f32.mrb[0].mxu0
  %v459 = vadd.f32 %v351, %v458
  %v460 = vpop.f32.mrb[0].mxu0
  %461 = vmatprep.mubr.bf16.mxu0 0
  %462 = vmatmul.mubr.bf16.gmra.mrb[0].mxu0 %v389
  %v463 = vpop.f32.mrb[0].mxu0
  %v464 = vadd.f32 %v351, %v463
  %v465 = vpop.f32.mrb[0].mxu0
  %v466 = vpop.f32.mrb[0].mxu0
  %v467 = vadd.f32 %v351, %v466
  %v468 = vpop.f32.mrb[0].mxu0
  %469 = vmatprep.mubr.bf16.mxu0 0
  %470 = vmatmul.mubr.bf16.gmra.mrb[0].mxu0 %v392
  %v471 = vpop.f32.mrb[0].mxu0
  %v472 = vadd.f32 %v351, %v471
  %v473 = vpop.f32.mrb[0].mxu0
  %v474 = vpop.f32.mrb[0].mxu0
  %v475 = vadd.f32 %v351, %v474
  %v476 = vpop.f32.mrb[0].mxu0
  %477 = vmatprep.mubr.bf16.mxu0 0
  %478 = vmatmul.mubr.bf16.gmra.mrb[0].mxu0 %v395
  %v479 = vpop.f32.mrb[0].mxu0
  %v480 = vadd.f32 %v351, %v479
  %v481 = vpop.f32.mrb[0].mxu0
  %v482 = vpop.f32.mrb[0].mxu0
  %v483 = vadd.f32 %v351, %v482
  %v484 = vpop.f32.mrb[0].mxu0
  %485 = vdwg.mxu0
  %v486 = vmax.f32 %v432, 0.0
  %v487 = vmax.f32 %v435, 0.0
  %v488 = vmax.f32 %v440, 0.0
  %v489 = vmax.f32 %v443, 0.0
  %v490 = vmax.f32 %v448, 0.0
  %v491 = vmax.f32 %v451, 0.0
  %v492 = vmax.f32 %v456, 0.0
  %v493 = vmax.f32 %v459, 0.0
  %v494 = vmax.f32 %v464, 0.0
  %v495 = vmax.f32 %v467, 0.0
  %v496 = vmax.f32 %v472, 0.0
  %v497 = vmax.f32 %v475, 0.0
  %v498 = vmax.f32 %v480, 0.0
  %v499 = vmax.f32 %v483, 0.0
  %v500 = vadd.f32 %v486, %v278
  %v501 = vadd.f32 %v487, %v281
  %v502 = vadd.f32 %v488, %v286
  %v503 = vadd.f32 %v489, %v289
  %v504 = vadd.f32 %v490, %v294
  %v505 = vadd.f32 %v491, %v297
  %v506 = vadd.f32 %v492, %v302
  %v507 = vadd.f32 %v493, %v305
  %v508 = vadd.f32 %v494, %v310
  %v509 = vadd.f32 %v495, %v313
  %v510 = vadd.f32 %v496, %v318
  %v511 = vadd.f32 %v497, %v321
  %v512 = vadd.f32 %v498, %v326
  %v513 = vadd.f32 %v499, %v329
  %v514 = vld [vmem:[%s3 + $0x40] sm:$0xf]
  %v515 = vld [vmem:[%s3 + $0x44] sm:$0xf]
  %v516 = vld [vmem:[%s3 + $0x48] sm:$0xf]
  %v517 = vld [vmem:[%s3 + $0x4c] sm:$0xf]
  %v518 = vld [vmem:[%s3 + $0x50] sm:$0xf]
  %v519 = vld [vmem:[%s3 + $0x54] sm:$0xf]
  %v520 = vld [vmem:[%s3 + $0x58] sm:$0xf]
  %v521 = vld [vmem:[%s3 + $0x5c] sm:$0xf]
  %v522 = vpack.c.bf16 %v501, %v500
  %v523 = vpack.c.bf16 %v503, %v502
  %v524 = vpack.c.bf16 %v505, %v504
  %v525 = vpack.c.bf16 %v507, %v506
  %v526 = vpack.c.bf16 %v509, %v508
  %v527 = vpack.c.bf16 %v511, %v510
  %v528 = vpack.c.bf16 %v513, %v512
  %v529 = vld [vmem:[%s4 + $0x3] sm:$0x1]
  %v530 = vlaneseq
  %v531 = vshrl.u32 %v530, 7
  %v532 = vsub.s32 0, %v531
  %v533 = vrot.slane %v529, %v532
  %v542 = vunpack.c.l.b16 %v514
  %v543 = vunpack.c.l.b16 %v515
  %v544 = vunpack.c.l.b16 %v516
  %v545 = vunpack.c.l.b16 %v517
  %v546 = vunpack.c.l.b16 %v518
  %v547 = vunpack.c.l.b16 %v519
  %v548 = vunpack.c.l.b16 %v520
  %v549 = vunpack.c.l.b16 %v521
  %v550 = vpack.c.b16 %v543, %v542
  %v551 = vpack.c.b16 %v545, %v544
  %v552 = vpack.c.b16 %v547, %v546
  %v553 = vpack.c.b16 %v549, %v548
  %v559 = vsel %vm221, %v522, 0
  %v562 = vsel %vm221, %v523, 0
  %v565 = vsel %vm221, %v524, 0
  %v568 = vsel %vm221, %v525, 0
  %v571 = vsel %vm221, %v526, 0
  %v574 = vsel %vm221, %v527, 0
  %v577 = vsel %vm221, %v528, 0
  %579 = vmatprep.subr.bf16.mxu0 0
  %580 = vmatpush1.bf16.msra.mxu0 %v550
  %581 = vmatprep.subr.bf16.mxu0 0
  %582 = vmatpush1.bf16.msra.mxu0 %v551
  %583 = vmatprep.subr.bf16.mxu0 0
  %584 = vmatpush1.bf16.msra.mxu0 %v552
  %585 = vmatprep.subr.bf16.mxu0 0
  %586 = vmatpush1.bf16.msra.mxu0 %v553
  %587 = vmatprep.subr.bf16.mxu0 0
  %588 = vmatpush1.bf16.msra.mxu0 0
  %589 = vmatprep.subr.bf16.mxu0 0
  %590 = vmatpush1.bf16.msra.mxu0 0
  %591 = vmatprep.subr.bf16.mxu0 0
  %592 = vmatpush1.bf16.msra.mxu0 0
  %593 = vmatprep.subr.bf16.mxu0 0
  %594 = vmatpush1.bf16.msra.mxu0 0
  %595 = vmatprep.subr.bf16.mxu0 0
  %596 = vmatpush1.bf16.msra.mxu0 0
  %597 = vmatprep.subr.bf16.mxu0 0
  %598 = vmatpush1.bf16.msra.mxu0 0
  %599 = vmatprep.subr.bf16.mxu0 0
  %600 = vmatpush1.bf16.msra.mxu0 0
  %601 = vmatprep.subr.bf16.mxu0 0
  %602 = vmatpush1.bf16.msra.mxu0 0
  %603 = vmatprep.subr.bf16.mxu0 0
  %604 = vmatpush1.bf16.msra.mxu0 0
  %605 = vmatprep.subr.bf16.mxu0 0
  %606 = vmatpush1.bf16.msra.mxu0 0
  %607 = vmatprep.subr.bf16.mxu0 0
  %608 = vmatpush1.bf16.msra.mxu0 0
  %609 = vmatprep.subr.bf16.mxu0 0
  %610 = vmatpush1.bf16.msra.mxu0 0
  %611 = vmatprep.mubr.bf16.mxu0 0
  %612 = vmatmul.mubr.bf16.gmra.mrb[0].mxu0 %v559
  %v613 = vpop.f32.mrb[0].mxu0
  %v614 = vadd.f32 %v533, %v613
  %v615 = vpop.f32.mrb[0].mxu0
  %v616 = vpop.f32.mrb[0].mxu0
  %v617 = vadd.f32 %v533, %v616
  %v618 = vpop.f32.mrb[0].mxu0
  %619 = vmatprep.mubr.bf16.mxu0 0
  %620 = vmatmul.mubr.bf16.gmra.mrb[0].mxu0 %v562
  %v621 = vpop.f32.mrb[0].mxu0
  %v622 = vadd.f32 %v533, %v621
  %v623 = vpop.f32.mrb[0].mxu0
  %v624 = vpop.f32.mrb[0].mxu0
  %v625 = vadd.f32 %v533, %v624
  %v626 = vpop.f32.mrb[0].mxu0
  %627 = vmatprep.mubr.bf16.mxu0 0
  %628 = vmatmul.mubr.bf16.gmra.mrb[0].mxu0 %v565
  %v629 = vpop.f32.mrb[0].mxu0
  %v630 = vadd.f32 %v533, %v629
  %v631 = vpop.f32.mrb[0].mxu0
  %v632 = vpop.f32.mrb[0].mxu0
  %v633 = vadd.f32 %v533, %v632
  %v634 = vpop.f32.mrb[0].mxu0
  %635 = vmatprep.mubr.bf16.mxu0 0
  %636 = vmatmul.mubr.bf16.gmra.mrb[0].mxu0 %v568
  %v637 = vpop.f32.mrb[0].mxu0
  %v638 = vadd.f32 %v533, %v637
  %v639 = vpop.f32.mrb[0].mxu0
  %v640 = vpop.f32.mrb[0].mxu0
  %v641 = vadd.f32 %v533, %v640
  %v642 = vpop.f32.mrb[0].mxu0
  %643 = vmatprep.mubr.bf16.mxu0 0
  %644 = vmatmul.mubr.bf16.gmra.mrb[0].mxu0 %v571
  %v645 = vpop.f32.mrb[0].mxu0
  %v646 = vadd.f32 %v533, %v645
  %v647 = vpop.f32.mrb[0].mxu0
  %v648 = vpop.f32.mrb[0].mxu0
  %v649 = vadd.f32 %v533, %v648
  %v650 = vpop.f32.mrb[0].mxu0
  %651 = vmatprep.mubr.bf16.mxu0 0
  %652 = vmatmul.mubr.bf16.gmra.mrb[0].mxu0 %v574
  %v653 = vpop.f32.mrb[0].mxu0
  %v654 = vadd.f32 %v533, %v653
  %v655 = vpop.f32.mrb[0].mxu0
  %v656 = vpop.f32.mrb[0].mxu0
  %v657 = vadd.f32 %v533, %v656
  %v658 = vpop.f32.mrb[0].mxu0
  %659 = vmatprep.mubr.bf16.mxu0 0
  %660 = vmatmul.mubr.bf16.gmra.mrb[0].mxu0 %v577
  %v661 = vpop.f32.mrb[0].mxu0
  %v662 = vadd.f32 %v533, %v661
  %v663 = vpop.f32.mrb[0].mxu0
  %v664 = vpop.f32.mrb[0].mxu0
  %v665 = vadd.f32 %v533, %v664
  %v666 = vpop.f32.mrb[0].mxu0
  %667 = vdwg.mxu0
  %v668 = vmax.f32 %v614, 0.0
  %v669 = vmax.f32 %v617, 0.0
  %v670 = vmax.f32 %v622, 0.0
  %v671 = vmax.f32 %v625, 0.0
  %v672 = vmax.f32 %v630, 0.0
  %v673 = vmax.f32 %v633, 0.0
  %v674 = vmax.f32 %v638, 0.0
  %v675 = vmax.f32 %v641, 0.0
  %v676 = vmax.f32 %v646, 0.0
  %v677 = vmax.f32 %v649, 0.0
  %v678 = vmax.f32 %v654, 0.0
  %v679 = vmax.f32 %v657, 0.0
  %v680 = vmax.f32 %v662, 0.0
  %v681 = vmax.f32 %v665, 0.0
  %v682 = vld [vmem:[%s3 + $0x60] sm:$0xf]
  %v683 = vld [vmem:[%s3 + $0x64] sm:$0xf]
  %v684 = vld [vmem:[%s3 + $0x68] sm:$0xf]
  %v685 = vld [vmem:[%s3 + $0x6c] sm:$0xf]
  %v686 = vld [vmem:[%s3 + $0x70] sm:$0xf]
  %v687 = vld [vmem:[%s3 + $0x74] sm:$0xf]
  %v688 = vld [vmem:[%s3 + $0x78] sm:$0xf]
  %v689 = vld [vmem:[%s3 + $0x7c] sm:$0xf]
  %v690 = vpack.c.bf16 %v669, %v668
  %v691 = vpack.c.bf16 %v671, %v670
  %v692 = vpack.c.bf16 %v673, %v672
  %v693 = vpack.c.bf16 %v675, %v674
  %v694 = vpack.c.bf16 %v677, %v676
  %v695 = vpack.c.bf16 %v679, %v678
  %v696 = vpack.c.bf16 %v681, %v680
  %v697 = vld [vmem:[%s4 + $0x4] sm:$0x1]
  %v698 = vlaneseq
  %v699 = vshrl.u32 %v698, 7
  %v700 = vsub.s32 0, %v699
  %v701 = vrot.slane %v697, %v700
  %v710 = vunpack.c.l.b16 %v682
  %v711 = vunpack.c.l.b16 %v683
  %v712 = vunpack.c.l.b16 %v684
  %v713 = vunpack.c.l.b16 %v685
  %v714 = vunpack.c.l.b16 %v686
  %v715 = vunpack.c.l.b16 %v687
  %v716 = vunpack.c.l.b16 %v688
  %v717 = vunpack.c.l.b16 %v689
  %v718 = vpack.c.b16 %v711, %v710
  %v719 = vpack.c.b16 %v713, %v712
  %v720 = vpack.c.b16 %v715, %v714
  %v721 = vpack.c.b16 %v717, %v716
  %v727 = vsel %vm221, %v690, 0
  %v730 = vsel %vm221, %v691, 0
  %v733 = vsel %vm221, %v692, 0
  %v736 = vsel %vm221, %v693, 0
  %v739 = vsel %vm221, %v694, 0
  %v742 = vsel %vm221, %v695, 0
  %v745 = vsel %vm221, %v696, 0
  %747 = vmatprep.subr.bf16.mxu0 0
  %748 = vmatpush1.bf16.msra.mxu0 %v718
  %749 = vmatprep.subr.bf16.mxu0 0
  %750 = vmatpush1.bf16.msra.mxu0 %v719
  %751 = vmatprep.subr.bf16.mxu0 0
  %752 = vmatpush1.bf16.msra.mxu0 %v720
  %753 = vmatprep.subr.bf16.mxu0 0
  %754 = vmatpush1.bf16.msra.mxu0 %v721
  %755 = vmatprep.subr.bf16.mxu0 0
  %756 = vmatpush1.bf16.msra.mxu0 0
  %757 = vmatprep.subr.bf16.mxu0 0
  %758 = vmatpush1.bf16.msra.mxu0 0
  %759 = vmatprep.subr.bf16.mxu0 0
  %760 = vmatpush1.bf16.msra.mxu0 0
  %761 = vmatprep.subr.bf16.mxu0 0
  %762 = vmatpush1.bf16.msra.mxu0 0
  %763 = vmatprep.subr.bf16.mxu0 0
  %764 = vmatpush1.bf16.msra.mxu0 0
  %765 = vmatprep.subr.bf16.mxu0 0
  %766 = vmatpush1.bf16.msra.mxu0 0
  %767 = vmatprep.subr.bf16.mxu0 0
  %768 = vmatpush1.bf16.msra.mxu0 0
  %769 = vmatprep.subr.bf16.mxu0 0
  %770 = vmatpush1.bf16.msra.mxu0 0
  %771 = vmatprep.subr.bf16.mxu0 0
  %772 = vmatpush1.bf16.msra.mxu0 0
  %773 = vmatprep.subr.bf16.mxu0 0
  %774 = vmatpush1.bf16.msra.mxu0 0
  %775 = vmatprep.subr.bf16.mxu0 0
  %776 = vmatpush1.bf16.msra.mxu0 0
  %777 = vmatprep.subr.bf16.mxu0 0
  %778 = vmatpush1.bf16.msra.mxu0 0
  %779 = vmatprep.mubr.bf16.mxu0 0
  %780 = vmatmul.mubr.bf16.gmra.mrb[0].mxu0 %v727
  %v781 = vpop.f32.mrb[0].mxu0
  %v782 = vadd.f32 %v701, %v781
  %v783 = vpop.f32.mrb[0].mxu0
  %v784 = vpop.f32.mrb[0].mxu0
  %v785 = vadd.f32 %v701, %v784
  %v786 = vpop.f32.mrb[0].mxu0
  %787 = vmatprep.mubr.bf16.mxu0 0
  %788 = vmatmul.mubr.bf16.gmra.mrb[0].mxu0 %v730
  %v789 = vpop.f32.mrb[0].mxu0
  %v790 = vadd.f32 %v701, %v789
  %v791 = vpop.f32.mrb[0].mxu0
  %v792 = vpop.f32.mrb[0].mxu0
  %v793 = vadd.f32 %v701, %v792
  %v794 = vpop.f32.mrb[0].mxu0
  %795 = vmatprep.mubr.bf16.mxu0 0
  %796 = vmatmul.mubr.bf16.gmra.mrb[0].mxu0 %v733
  %v797 = vpop.f32.mrb[0].mxu0
  %v798 = vadd.f32 %v701, %v797
  %v799 = vpop.f32.mrb[0].mxu0
  %v800 = vpop.f32.mrb[0].mxu0
  %v801 = vadd.f32 %v701, %v800
  %v802 = vpop.f32.mrb[0].mxu0
  %803 = vmatprep.mubr.bf16.mxu0 0
  %804 = vmatmul.mubr.bf16.gmra.mrb[0].mxu0 %v736
  %v805 = vpop.f32.mrb[0].mxu0
  %v806 = vadd.f32 %v701, %v805
  %v807 = vpop.f32.mrb[0].mxu0
  %v808 = vpop.f32.mrb[0].mxu0
  %v809 = vadd.f32 %v701, %v808
  %v810 = vpop.f32.mrb[0].mxu0
  %811 = vmatprep.mubr.bf16.mxu0 0
  %812 = vmatmul.mubr.bf16.gmra.mrb[0].mxu0 %v739
  %v813 = vpop.f32.mrb[0].mxu0
  %v814 = vadd.f32 %v701, %v813
  %v815 = vpop.f32.mrb[0].mxu0
  %v816 = vpop.f32.mrb[0].mxu0
  %v817 = vadd.f32 %v701, %v816
  %v818 = vpop.f32.mrb[0].mxu0
  %819 = vmatprep.mubr.bf16.mxu0 0
  %820 = vmatmul.mubr.bf16.gmra.mrb[0].mxu0 %v742
  %v821 = vpop.f32.mrb[0].mxu0
  %v822 = vadd.f32 %v701, %v821
  %v823 = vpop.f32.mrb[0].mxu0
  %v824 = vpop.f32.mrb[0].mxu0
  %v825 = vadd.f32 %v701, %v824
  %v826 = vpop.f32.mrb[0].mxu0
  %827 = vmatprep.mubr.bf16.mxu0 0
  %828 = vmatmul.mubr.bf16.gmra.mrb[0].mxu0 %v745
  %v829 = vpop.f32.mrb[0].mxu0
  %v830 = vadd.f32 %v701, %v829
  %v831 = vpop.f32.mrb[0].mxu0
  %v832 = vpop.f32.mrb[0].mxu0
  %v833 = vadd.f32 %v701, %v832
  %v834 = vpop.f32.mrb[0].mxu0
  %835 = vdwg.mxu0
  %v836 = vld [vmem:[%s3 + $0x80] sm:$0xf]
  %v837 = vld [vmem:[%s3 + $0x84] sm:$0xf]
  %v838 = vld [vmem:[%s3 + $0x88] sm:$0xf]
  %v839 = vld [vmem:[%s3 + $0x8c] sm:$0xf]
  %v840 = vld [vmem:[%s3 + $0x90] sm:$0xf]
  %v841 = vld [vmem:[%s3 + $0x94] sm:$0xf]
  %v842 = vld [vmem:[%s3 + $0x98] sm:$0xf]
  %v843 = vld [vmem:[%s3 + $0x9c] sm:$0xf]
  %v844 = vpack.c.bf16 %v785, %v782
  %v845 = vpack.c.bf16 %v793, %v790
  %v846 = vpack.c.bf16 %v801, %v798
  %v847 = vpack.c.bf16 %v809, %v806
  %v848 = vpack.c.bf16 %v817, %v814
  %v849 = vpack.c.bf16 %v825, %v822
  %v850 = vpack.c.bf16 %v833, %v830
  %v851 = vld [vmem:[%s4 + $0x5] sm:$0x1]
  %v852 = vlaneseq
  %v853 = vshrl.u32 %v852, 7
  %v854 = vsub.s32 0, %v853
  %v855 = vrot.slane %v851, %v854
  %v864 = vunpack.c.l.b16 %v836
  %v865 = vunpack.c.l.b16 %v837
  %v866 = vunpack.c.l.b16 %v838
  %v867 = vunpack.c.l.b16 %v839
  %v868 = vunpack.c.l.b16 %v840
  %v869 = vunpack.c.l.b16 %v841
  %v870 = vunpack.c.l.b16 %v842
  %v871 = vunpack.c.l.b16 %v843
  %v872 = vpack.c.b16 %v865, %v864
  %v873 = vpack.c.b16 %v867, %v866
  %v874 = vpack.c.b16 %v869, %v868
  %v875 = vpack.c.b16 %v871, %v870
  %v881 = vsel %vm221, %v844, 0
  %v884 = vsel %vm221, %v845, 0
  %v887 = vsel %vm221, %v846, 0
  %v890 = vsel %vm221, %v847, 0
  %v893 = vsel %vm221, %v848, 0
  %v896 = vsel %vm221, %v849, 0
  %v899 = vsel %vm221, %v850, 0
  %901 = vmatprep.subr.bf16.mxu0 0
  %902 = vmatpush1.bf16.msra.mxu0 %v872
  %903 = vmatprep.subr.bf16.mxu0 0
  %904 = vmatpush1.bf16.msra.mxu0 %v873
  %905 = vmatprep.subr.bf16.mxu0 0
  %906 = vmatpush1.bf16.msra.mxu0 %v874
  %907 = vmatprep.subr.bf16.mxu0 0
  %908 = vmatpush1.bf16.msra.mxu0 %v875
  %909 = vmatprep.subr.bf16.mxu0 0
  %910 = vmatpush1.bf16.msra.mxu0 0
  %911 = vmatprep.subr.bf16.mxu0 0
  %912 = vmatpush1.bf16.msra.mxu0 0
  %913 = vmatprep.subr.bf16.mxu0 0
  %914 = vmatpush1.bf16.msra.mxu0 0
  %915 = vmatprep.subr.bf16.mxu0 0
  %916 = vmatpush1.bf16.msra.mxu0 0
  %917 = vmatprep.subr.bf16.mxu0 0
  %918 = vmatpush1.bf16.msra.mxu0 0
  %919 = vmatprep.subr.bf16.mxu0 0
  %920 = vmatpush1.bf16.msra.mxu0 0
  %921 = vmatprep.subr.bf16.mxu0 0
  %922 = vmatpush1.bf16.msra.mxu0 0
  %923 = vmatprep.subr.bf16.mxu0 0
  %924 = vmatpush1.bf16.msra.mxu0 0
  %925 = vmatprep.subr.bf16.mxu0 0
  %926 = vmatpush1.bf16.msra.mxu0 0
  %927 = vmatprep.subr.bf16.mxu0 0
  %928 = vmatpush1.bf16.msra.mxu0 0
  %929 = vmatprep.subr.bf16.mxu0 0
  %930 = vmatpush1.bf16.msra.mxu0 0
  %931 = vmatprep.subr.bf16.mxu0 0
  %932 = vmatpush1.bf16.msra.mxu0 0
  %933 = vmatprep.mubr.bf16.mxu0 0
  %934 = vmatmul.mubr.bf16.gmra.mrb[0].mxu0 %v881
  %v935 = vpop.f32.mrb[0].mxu0
  %v936 = vadd.f32 %v855, %v935
  %v937 = vpop.f32.mrb[0].mxu0
  %v938 = vpop.f32.mrb[0].mxu0
  %v939 = vadd.f32 %v855, %v938
  %v940 = vpop.f32.mrb[0].mxu0
  %941 = vmatprep.mubr.bf16.mxu0 0
  %942 = vmatmul.mubr.bf16.gmra.mrb[0].mxu0 %v884
  %v943 = vpop.f32.mrb[0].mxu0
  %v944 = vadd.f32 %v855, %v943
  %v945 = vpop.f32.mrb[0].mxu0
  %v946 = vpop.f32.mrb[0].mxu0
  %v947 = vadd.f32 %v855, %v946
  %v948 = vpop.f32.mrb[0].mxu0
  %949 = vmatprep.mubr.bf16.mxu0 0
  %950 = vmatmul.mubr.bf16.gmra.mrb[0].mxu0 %v887
  %v951 = vpop.f32.mrb[0].mxu0
  %v952 = vadd.f32 %v855, %v951
  %v953 = vpop.f32.mrb[0].mxu0
  %v954 = vpop.f32.mrb[0].mxu0
  %v955 = vadd.f32 %v855, %v954
  %v956 = vpop.f32.mrb[0].mxu0
  %957 = vmatprep.mubr.bf16.mxu0 0
  %958 = vmatmul.mubr.bf16.gmra.mrb[0].mxu0 %v890
  %v959 = vpop.f32.mrb[0].mxu0
  %v960 = vadd.f32 %v855, %v959
  %v961 = vpop.f32.mrb[0].mxu0
  %v962 = vpop.f32.mrb[0].mxu0
  %v963 = vadd.f32 %v855, %v962
  %v964 = vpop.f32.mrb[0].mxu0
  %965 = vmatprep.mubr.bf16.mxu0 0
  %966 = vmatmul.mubr.bf16.gmra.mrb[0].mxu0 %v893
  %v967 = vpop.f32.mrb[0].mxu0
  %v968 = vadd.f32 %v855, %v967
  %v969 = vpop.f32.mrb[0].mxu0
  %v970 = vpop.f32.mrb[0].mxu0
  %v971 = vadd.f32 %v855, %v970
  %v972 = vpop.f32.mrb[0].mxu0
  %973 = vmatprep.mubr.bf16.mxu0 0
  %974 = vmatmul.mubr.bf16.gmra.mrb[0].mxu0 %v896
  %v975 = vpop.f32.mrb[0].mxu0
  %v976 = vadd.f32 %v855, %v975
  %v977 = vpop.f32.mrb[0].mxu0
  %v978 = vpop.f32.mrb[0].mxu0
  %v979 = vadd.f32 %v855, %v978
  %v980 = vpop.f32.mrb[0].mxu0
  %981 = vmatprep.mubr.bf16.mxu0 0
  %982 = vmatmul.mubr.bf16.gmra.mrb[0].mxu0 %v899
  %v983 = vpop.f32.mrb[0].mxu0
  %v984 = vadd.f32 %v855, %v983
  %v985 = vpop.f32.mrb[0].mxu0
  %v986 = vpop.f32.mrb[0].mxu0
  %v987 = vadd.f32 %v855, %v986
  %v988 = vpop.f32.mrb[0].mxu0
  %989 = vdwg.mxu0
  %v990 = vadd.f32 %v936, %v944
  %v991 = vadd.f32 %v939, %v947
  %v992 = vadd.f32 %v990, %v952
  %v993 = vadd.f32 %v991, %v955
  %v994 = vadd.f32 %v992, %v960
  %v995 = vadd.f32 %v993, %v963
  %998 = vrot.lane.b32.xlu0 %v968, 126
  %v999 = vpop.permute.xlu0 %998
  %1000 = vrot.lane.b32.xlu0 %v971, 126
  %v1001 = vpop.permute.xlu0 %1000
  %v1004 = vadd.f32 %v994, %v999
  %v1005 = vadd.f32 %v995, %v1001
  %1008 = vrot.lane.b32.xlu0 %v976, 126
  %v1009 = vpop.permute.xlu0 %1008
  %1010 = vrot.lane.b32.xlu0 %v979, 126
  %v1011 = vpop.permute.xlu0 %1010
  %v1014 = vadd.f32 %v1004, %v1009
  %v1015 = vadd.f32 %v1005, %v1011
  %1018 = vrot.lane.b32.xlu0 %v984, 126
  %v1019 = vpop.permute.xlu0 %1018
  %1020 = vrot.lane.b32.xlu0 %v987, 126
  %v1021 = vpop.permute.xlu0 %1020
  %v1024 = vadd.f32 %v1014, %v1019
  %v1025 = vadd.f32 %v1015, %v1021
  %v1026 = vmax.f32 %v936, 0.0
  %v1027 = vmax.f32 %v939, 0.0
  %v1028 = vmax.f32 %v944, 0.0
  %v1029 = vmax.f32 %v947, 0.0
  %v1030 = vmax.f32 %v952, 0.0
  %v1031 = vmax.f32 %v955, 0.0
  %v1032 = vmax.f32 %v960, 0.0
  %v1033 = vmax.f32 %v963, 0.0
  %v1034 = vld [vmem:[%s3 + $0xa0] sm:$0xf]
  %v1035 = vld [vmem:[%s3 + $0xa4] sm:$0xf]
  %v1036 = vld [vmem:[%s3 + $0xa8] sm:$0xf]
  %v1037 = vld [vmem:[%s3 + $0xac] sm:$0xf]
  %v1038 = vld [vmem:[%s3 + $0xb0] sm:$0xf]
  %v1039 = vld [vmem:[%s3 + $0xb4] sm:$0xf]
  %v1040 = vld [vmem:[%s3 + $0xb8] sm:$0xf]
  %v1041 = vld [vmem:[%s3 + $0xbc] sm:$0xf]
  %v1042 = vpack.c.bf16 %v1027, %v1026
  %v1043 = vpack.c.bf16 %v1029, %v1028
  %v1044 = vpack.c.bf16 %v1031, %v1030
  %v1045 = vpack.c.bf16 %v1033, %v1032
  %v1046 = vld [vmem:[%s4 + $0x6] sm:$0x1]
  %v1047 = vlaneseq
  %v1048 = vshrl.u32 %v1047, 7
  %v1049 = vsub.s32 0, %v1048
  %v1050 = vrot.slane %v1046, %v1049
  %v1059 = vunpack.c.l.b16 %v1034
  %v1060 = vunpack.c.l.b16 %v1035
  %v1061 = vunpack.c.l.b16 %v1036
  %v1062 = vunpack.c.l.b16 %v1037
  %v1063 = vunpack.c.l.b16 %v1038
  %v1064 = vunpack.c.l.b16 %v1039
  %v1065 = vunpack.c.l.b16 %v1040
  %v1066 = vunpack.c.l.b16 %v1041
  %v1067 = vpack.c.b16 %v1060, %v1059
  %v1068 = vpack.c.b16 %v1062, %v1061
  %v1069 = vpack.c.b16 %v1064, %v1063
  %v1070 = vpack.c.b16 %v1066, %v1065
  %v1076 = vsel %vm221, %v1042, 0
  %v1079 = vsel %vm221, %v1043, 0
  %v1082 = vsel %vm221, %v1044, 0
  %v1085 = vsel %vm221, %v1045, 0
  %1087 = vmatprep.subr.bf16.mxu0 0
  %1088 = vmatpush1.bf16.msra.mxu0 %v1067
  %1089 = vmatprep.subr.bf16.mxu0 0
  %1090 = vmatpush1.bf16.msra.mxu0 %v1068
  %1091 = vmatprep.subr.bf16.mxu0 0
  %1092 = vmatpush1.bf16.msra.mxu0 %v1069
  %1093 = vmatprep.subr.bf16.mxu0 0
  %1094 = vmatpush1.bf16.msra.mxu0 %v1070
  %1095 = vmatprep.subr.bf16.mxu0 0
  %1096 = vmatpush1.bf16.msra.mxu0 0
  %1097 = vmatprep.subr.bf16.mxu0 0
  %1098 = vmatpush1.bf16.msra.mxu0 0
  %1099 = vmatprep.subr.bf16.mxu0 0
  %1100 = vmatpush1.bf16.msra.mxu0 0
  %1101 = vmatprep.subr.bf16.mxu0 0
  %1102 = vmatpush1.bf16.msra.mxu0 0
  %1103 = vmatprep.subr.bf16.mxu0 0
  %1104 = vmatpush1.bf16.msra.mxu0 0
  %1105 = vmatprep.subr.bf16.mxu0 0
  %1106 = vmatpush1.bf16.msra.mxu0 0
  %1107 = vmatprep.subr.bf16.mxu0 0
  %1108 = vmatpush1.bf16.msra.mxu0 0
  %1109 = vmatprep.subr.bf16.mxu0 0
  %1110 = vmatpush1.bf16.msra.mxu0 0
  %1111 = vmatprep.subr.bf16.mxu0 0
  %1112 = vmatpush1.bf16.msra.mxu0 0
  %1113 = vmatprep.subr.bf16.mxu0 0
  %1114 = vmatpush1.bf16.msra.mxu0 0
  %1115 = vmatprep.subr.bf16.mxu0 0
  %1116 = vmatpush1.bf16.msra.mxu0 0
  %1117 = vmatprep.subr.bf16.mxu0 0
  %1118 = vmatpush1.bf16.msra.mxu0 0
  %1119 = vmatprep.mubr.bf16.mxu0 0
  %1120 = vmatmul.mubr.bf16.gmra.mrb[0].mxu0 %v1076
  %v1121 = vpop.f32.mrb[0].mxu0
  %v1122 = vadd.f32 %v1050, %v1121
  %v1123 = vpop.f32.mrb[0].mxu0
  %v1124 = vpop.f32.mrb[0].mxu0
  %v1125 = vadd.f32 %v1050, %v1124
  %v1126 = vpop.f32.mrb[0].mxu0
  %1127 = vmatprep.mubr.bf16.mxu0 0
  %1128 = vmatmul.mubr.bf16.gmra.mrb[0].mxu0 %v1079
  %v1129 = vpop.f32.mrb[0].mxu0
  %v1130 = vadd.f32 %v1050, %v1129
  %v1131 = vpop.f32.mrb[0].mxu0
  %v1132 = vpop.f32.mrb[0].mxu0
  %v1133 = vadd.f32 %v1050, %v1132
  %v1134 = vpop.f32.mrb[0].mxu0
  %1135 = vmatprep.mubr.bf16.mxu0 0
  %1136 = vmatmul.mubr.bf16.gmra.mrb[0].mxu0 %v1082
  %v1137 = vpop.f32.mrb[0].mxu0
  %v1138 = vadd.f32 %v1050, %v1137
  %v1139 = vpop.f32.mrb[0].mxu0
  %v1140 = vpop.f32.mrb[0].mxu0
  %v1141 = vadd.f32 %v1050, %v1140
  %v1142 = vpop.f32.mrb[0].mxu0
  %1143 = vmatprep.mubr.bf16.mxu0 0
  %1144 = vmatmul.mubr.bf16.gmra.mrb[0].mxu0 %v1085
  %v1145 = vpop.f32.mrb[0].mxu0
  %v1146 = vadd.f32 %v1050, %v1145
  %v1147 = vpop.f32.mrb[0].mxu0
  %v1148 = vpop.f32.mrb[0].mxu0
  %v1149 = vadd.f32 %v1050, %v1148
  %v1150 = vpop.f32.mrb[0].mxu0
  %1151 = vdwg.mxu0
  %v1152 = vxor.u32 %v1122, 2147483648
  %v1153 = vxor.u32 %v1125, 2147483648
  %v1154 = vmul.f32 %v1152, 1.442695
  %v1155 = vpow.pop %v1154
  %v1156 = vmul.f32 %v1153, 1.442695
  %v1157 = vpow.pop %v1156
  %v1158 = vadd.f32 %v1155, 1.0
  %v1159 = vadd.f32 %v1157, 1.0
  %v1160 = vrcp.pop %v1158
  %v1161 = vmul.f32 1.0, %v1160
  %v1162 = vrcp.pop %v1159
  %v1163 = vmul.f32 1.0, %v1162
  %v1164 = vxor.u32 %v1130, 2147483648
  %v1165 = vxor.u32 %v1133, 2147483648
  %v1166 = vmul.f32 %v1164, 1.442695
  %v1167 = vpow.pop %v1166
  %v1168 = vmul.f32 %v1165, 1.442695
  %v1169 = vpow.pop %v1168
  %v1170 = vadd.f32 %v1167, 1.0
  %v1171 = vadd.f32 %v1169, 1.0
  %v1172 = vrcp.pop %v1170
  %v1173 = vmul.f32 1.0, %v1172
  %v1174 = vrcp.pop %v1171
  %v1175 = vmul.f32 1.0, %v1174
  %v1176 = vxor.u32 %v1138, 2147483648
  %v1177 = vxor.u32 %v1141, 2147483648
  %v1178 = vmul.f32 %v1176, 1.442695
  %v1179 = vpow.pop %v1178
  %v1180 = vmul.f32 %v1177, 1.442695
  %v1181 = vpow.pop %v1180
  %v1182 = vadd.f32 %v1179, 1.0
  %v1183 = vadd.f32 %v1181, 1.0
  %v1184 = vrcp.pop %v1182
  %v1185 = vmul.f32 1.0, %v1184
  %v1186 = vrcp.pop %v1183
  %v1187 = vmul.f32 1.0, %v1186
  %v1188 = vxor.u32 %v1146, 2147483648
  %v1189 = vxor.u32 %v1149, 2147483648
  %v1190 = vmul.f32 %v1188, 1.442695
  %v1191 = vpow.pop %v1190
  %v1192 = vmul.f32 %v1189, 1.442695
  %v1193 = vpow.pop %v1192
  %v1194 = vadd.f32 %v1191, 1.0
  %v1195 = vadd.f32 %v1193, 1.0
  %v1196 = vrcp.pop %v1194
  %v1197 = vmul.f32 1.0, %v1196
  %v1198 = vrcp.pop %v1195
  %v1199 = vmul.f32 1.0, %v1198
  %v1200 = vld [vmem:[%s1] sm:$0xff]
  %v1201 = vld [vmem:[%s1 + $0x8] sm:$0xff]
  %v1202 = vmul.f32 %v1200, %v1200
  %v1203 = vmul.f32 %v1201, %v1201
  %vm1204 = vcmask 15360
  %v1205 = vsel %vm1204, %v1202, 0.0
  %1206 = vadd.xlane.f32.xlu0 %v1205
  %v1207 = vpop.xlane.xlu0 %1206
  %v1208 = vsel %vm1204, %v1203, 0.0
  %1209 = vadd.xlane.f32.xlu0 %v1208
  %v1210 = vpop.xlane.xlu0 %1209
  %vm1211 = vcmp.eq.f32.partialorder %v1207, 0.0
  %vm1212 = vcmp.eq.f32.partialorder %v1210, 0.0
  %v1213 = vrsqrt.pop %v1207
  %v1214 = vrsqrt.pop %v1210
  %v1215 = vsel %vm1211, 10.0, %v1213
  %v1216 = vsel %vm1212, 10.0, %v1214
  %v1217 = vmul.f32 %v1200, %v1215
  %v1218 = vmul.f32 %v1201, %v1216
  %1220 = vset.pattern.permute.xlu0 6
  %1221 = vperm.xlu0 %1220, %v1200
  %v1222 = vpop.permute.xlu0 %1221
  %1225 = vset.pattern.permute.xlu0 6
  %1226 = vperm.xlu0 %1225, %v1201
  %v1227 = vpop.permute.xlu0 %1226
  %v1229 = vmul.f32 %v1222, %v1217
  %v1230 = vmul.f32 %v1227, %v1218
  %1231 = vrot.lane.b32.xlu0 %v1200, 126
  %v1232 = vpop.permute.xlu0 %1231
  %1233 = vrot.lane.b32.xlu0 %v1201, 126
  %v1234 = vpop.permute.xlu0 %1233
  %v1237 = vsub.f32 %v1229, %v1232
  %v1238 = vsub.f32 %v1230, %v1234
  %v1239 = vmul.f32 %v1237, 0.5
  %v1240 = vmul.f32 %v1238, 0.5
  %v1241 = vadd.f32 %v1024, %v1239
  %v1242 = vadd.f32 %v1025, %v1240
  %1245 = vrot.lane.b32.xlu0 %v936, 2
  %v1246 = vpop.permute.xlu0 %1245
  %1247 = vrot.lane.b32.xlu0 %v939, 2
  %v1248 = vpop.permute.xlu0 %1247
  %1253 = vrot.lane.b32.xlu0 %v944, 4
  %v1254 = vpop.permute.xlu0 %1253
  %1255 = vrot.lane.b32.xlu0 %v947, 4
  %v1256 = vpop.permute.xlu0 %1255
  %1261 = vrot.lane.b32.xlu0 %v952, 6
  %v1262 = vpop.permute.xlu0 %1261
  %1263 = vrot.lane.b32.xlu0 %v955, 6
  %v1264 = vpop.permute.xlu0 %1263
  %1269 = vrot.lane.b32.xlu0 %v960, 8
  %v1270 = vpop.permute.xlu0 %1269
  %1271 = vrot.lane.b32.xlu0 %v963, 8
  %v1272 = vpop.permute.xlu0 %1271
  %1275 = vrot.lane.b32.xlu0 %v968, 8
  %v1276 = vpop.permute.xlu0 %1275
  %1277 = vrot.lane.b32.xlu0 %v971, 8
  %v1278 = vpop.permute.xlu0 %1277
  %1281 = vrot.lane.b32.xlu0 %v976, 10
  %v1282 = vpop.permute.xlu0 %1281
  %1283 = vrot.lane.b32.xlu0 %v979, 10
  %v1284 = vpop.permute.xlu0 %1283
  %1287 = vrot.lane.b32.xlu0 %v984, 12
  %v1288 = vpop.permute.xlu0 %1287
  %1289 = vrot.lane.b32.xlu0 %v987, 12
  %v1290 = vpop.permute.xlu0 %1289
  %1295 = vrot.lane.b32.xlu0 %v1161, 16
  %v1296 = vpop.permute.xlu0 %1295
  %1297 = vrot.lane.b32.xlu0 %v1163, 16
  %v1298 = vpop.permute.xlu0 %1297
  %1303 = vrot.lane.b32.xlu0 %v1173, 17
  %v1304 = vpop.permute.xlu0 %1303
  %1305 = vrot.lane.b32.xlu0 %v1175, 17
  %v1306 = vpop.permute.xlu0 %1305
  %1311 = vrot.lane.b32.xlu0 %v1185, 18
  %v1312 = vpop.permute.xlu0 %1311
  %1313 = vrot.lane.b32.xlu0 %v1187, 18
  %v1314 = vpop.permute.xlu0 %1313
  %1319 = vrot.lane.b32.xlu0 %v1197, 19
  %v1320 = vpop.permute.xlu0 %1319
  %1321 = vrot.lane.b32.xlu0 %v1199, 19
  %v1322 = vpop.permute.xlu0 %1321
  %v1325 = vsel %vm1204, %v1241, %v1246
  %v1326 = vsel %vm1204, %v1242, %v1248
  %vm1327 = vcmask 31744
  %v1328 = vsel %vm1327, %v1325, %v1254
  %v1329 = vsel %vm1327, %v1326, %v1256
  %vm1330 = vcmask 48128
  %v1331 = vsel %vm1330, %v1328, %v1262
  %v1332 = vsel %vm1330, %v1329, %v1264
  %v1333 = vsel %vm48, %v1331, %v1270
  %v1334 = vsel %vm48, %v1332, %v1272
  %vm1335 = vcmask 80896
  %v1336 = vsel %vm1335, %v1333, %v1276
  %v1337 = vsel %vm1335, %v1334, %v1278
  %vm1338 = vcmask 97280
  %v1339 = vsel %vm1338, %v1336, %v1282
  %v1340 = vsel %vm1338, %v1337, %v1284
  %vm1341 = vcmask 113664
  %v1342 = vsel %vm1341, %v1339, %v1288
  %v1343 = vsel %vm1341, %v1340, %v1290
  %vm1344 = vcmask 130048
  %v1345 = vsel %vm1344, %v1342, %v1296
  %v1346 = vsel %vm1344, %v1343, %v1298
  %vm1347 = vcmask 138240
  %v1348 = vsel %vm1347, %v1345, %v1304
  %v1349 = vsel %vm1347, %v1346, %v1306
  %vm1350 = vcmask 146432
  %v1351 = vsel %vm1350, %v1348, %v1312
  %v1352 = vsel %vm1350, %v1349, %v1314
  %vm1353 = vcmask 154624
  %v1354 = vsel %vm1353, %v1351, %v1320
  %v1355 = vsel %vm1353, %v1352, %v1322
  %vm1356 = vcmask 162816
  %v1357 = vsel %vm1356, %v1354, 0.0
  %v1358 = vsel %vm1356, %v1355, 0.0
  %1359 = vst [vmem:[%s5] sm:$0xff] %v1357
  %1360 = vst [vmem:[%s5 + $0x8] sm:$0xff] %v1358
  // Predicated region
  $region22: #{pinnsf_forward.1} parent=0 // pred_check
    _
  $region23: #{pinnsf_forward.1} parent=0 // pred_check_branch
    %1362 = sbr.rel (0) target = $region25
  $region24: #{pinnsf_forward.1} parent=0 // pred_region
    _
  $region25: #{pinnsf_forward.1} parent=0 // pred_fallthru
    _
  // Predicated region
  $region26: #{pinnsf_forward.1} parent=0 // pred_check
    _
  $region27: #{pinnsf_forward.1} parent=0 // pred_check_branch
    %1364 = sbr.rel (0) target = $region29
  $region28: #{pinnsf_forward.1} parent=0 // pred_region
    _
  $region29: #{pinnsf_forward.1} parent=0 // pred_fallthru
    _

</llo_original>
